<compile_context>
chip_gen: v7x
topology: tpu7x:2x2x1
jax: 0.10.0
libtpu: 0.0.40
codegen_flags: <defaults>
</compile_context>

<pallas_src>
import jax
import jax.numpy as jnp
from jax import lax
from jax.experimental import pallas as pl
from jax.experimental.pallas import tpu as pltpu

HIDDEN = 128


def lstm_fc_kernel(x_ref, wih_ref, whh_ref, b_ref, fcw_ref, fcb_ref,
                   out_ref, pre_scr, hall_scr):
    # x_ref:    (B_pad, T)       time along lanes (one lane-dense tile)
    # wih_ref:  (1, 4H)          weight_ih reshaped (input_size == 1)
    # whh_ref:  (H, 4H)          weight_hh transposed
    # b_ref:    (1, 4H)          bias_ih + bias_hh
    # fcw_ref:  (T, H)           per-timestep fc weights
    # fcb_ref:  (1, T)           per-timestep fc biases
    # out_ref:  (B_pad, T)       single lane-dense output tile
    # pre_scr:  (T, B_pad, 4H)   hoisted input projection + bias
    # hall_scr: (T, B_pad, H)    per-step hidden states for the FC epilogue
    B_pad, T = x_ref.shape
    H = whh_ref.shape[0]

    wih = wih_ref[...]            # (1, 4H)
    bias = b_ref[...]             # (1, 4H)
    whh = whh_ref[...]            # (H, 4H)

    # ---- hoist input projection + bias off the recurrent dependency chain ----
    xx = x_ref[...]                                             # (B_pad, T)
    t_lane = lax.broadcasted_iota(jnp.int32, (B_pad, T), 1)
    for t in range(T):
        # extract column t via masked lane-reduce (avoids unaligned lane slices)
        x_col = jnp.sum(jnp.where(t_lane == t, xx, 0.0),
                        axis=1, keepdims=True)                  # (B_pad, 1)
        pre_scr[t] = x_col * wih + bias                         # (B_pad, 4H)

    # ---- serial LSTM recurrence: T is static, fully unrolled ----
    h = jnp.zeros((B_pad, H), jnp.float32)
    c = jnp.zeros((B_pad, H), jnp.float32)
    for t in range(T):
        gates = pre_scr[t] + jnp.dot(h, whh,
                                     preferred_element_type=jnp.float32)  # (B_pad, 4H)
        i_g = jax.nn.sigmoid(gates[:, 0 * H:1 * H])
        f_g = jax.nn.sigmoid(gates[:, 1 * H:2 * H])
        g_g = jnp.tanh(gates[:, 2 * H:3 * H])
        o_g = jax.nn.sigmoid(gates[:, 3 * H:4 * H])
        c = f_g * c + i_g * g_g
        h = o_g * jnp.tanh(c)
        hall_scr[t] = h

    # ---- batched per-timestep FC epilogue + one lane-dense store ----
    acc = jnp.zeros((B_pad, T), jnp.float32)
    for t in range(T):
        col = jnp.sum(hall_scr[t] * fcw_ref[t:t + 1, :],
                      axis=-1, keepdims=True)                   # (B_pad, 1)
        acc = jnp.where(t_lane == t, col, acc)                  # place into column t
    out_ref[...] = acc + fcb_ref[...]                           # single store


def wgan_discriminator_forward(x, params):
    """x: (B, T, 1) float32 -> (B, T, 1) float32 (matches the PyTorch module)."""
    B, T, _ = x.shape
    B_pad = max(8, ((B + 7) // 8) * 8)

    # lane-dense, batch-padded input (batch on sublanes, time on lanes)
    x_bt = jnp.zeros((B_pad, T), jnp.float32)
    x_bt = x_bt.at[:B, :].set(x[..., 0].astype(jnp.float32))

    wih = params["w_ih"].reshape(1, 4 * HIDDEN).astype(jnp.float32)    # (1, 4H)
    whh = params["w_hh"].T.astype(jnp.float32)                          # (H, 4H)
    b = (params["b_ih"] + params["b_hh"]).reshape(1, 4 * HIDDEN).astype(jnp.float32)
    fcw = params["fc_w"].astype(jnp.float32)                            # (T, H)
    fcb = params["fc_b"].reshape(1, T).astype(jnp.float32)              # (1, T)

    out = pl.pallas_call(
        lstm_fc_kernel,
        out_shape=jax.ShapeDtypeStruct((B_pad, T), jnp.float32),
        grid=(1,),
        in_specs=[
            pl.BlockSpec((B_pad, T), lambda i: (0, 0)),
            pl.BlockSpec((1, 4 * HIDDEN), lambda i: (0, 0)),
            pl.BlockSpec((HIDDEN, 4 * HIDDEN), lambda i: (0, 0)),
            pl.BlockSpec((1, 4 * HIDDEN), lambda i: (0, 0)),
            pl.BlockSpec((T, HIDDEN), lambda i: (0, 0)),
            pl.BlockSpec((1, T), lambda i: (0, 0)),
        ],
        out_specs=pl.BlockSpec((B_pad, T), lambda i: (0, 0)),
        scratch_shapes=[
            pltpu.VMEM((T, B_pad, 4 * HIDDEN), jnp.float32),  # hoisted input projection
            pltpu.VMEM((T, B_pad, HIDDEN), jnp.float32),      # h_all for FC epilogue
        ],
        compiler_params=pltpu.CompilerParams(
            dimension_semantics=("arbitrary",)),
    )(x_bt, wih, whh, b, fcw, fcb)

    return out[:B, :, None]                                    # (B, T, 1)


def reference_forward(x, params):
    """Pure-JAX reference with identical PyTorch LSTM semantics (gate order i,f,g,o)."""
    B, T, _ = x.shape
    H = HIDDEN
    w_ih, w_hh = params["w_ih"], params["w_hh"]
    b = params["b_ih"] + params["b_hh"]

    def step(carry, x_t):
        h, c = carry
        gates = x_t @ w_ih.T + h @ w_hh.T + b
        i = jax.nn.sigmoid(gates[:, :H])
        f = jax.nn.sigmoid(gates[:, H:2 * H])
        g = jnp.tanh(gates[:, 2 * H:3 * H])
        o = jax.nn.sigmoid(gates[:, 3 * H:])
        c = f * c + i * g
        h = o * jnp.tanh(c)
        return (h, c), h

    h0 = jnp.zeros((B, H), jnp.float32)
    c0 = jnp.zeros((B, H), jnp.float32)
    _, hs = lax.scan(step, (h0, c0), jnp.transpose(x, (1, 0, 2)))   # (T, B, H)
    hs = jnp.transpose(hs, (1, 0, 2))                               # (B, T, H)
    out = jnp.einsum("bth,th->bt", hs, params["fc_w"]) + params["fc_b"][None, :]
    return out[..., None]


if __name__ == "__main__":
    B, T = 2, 8  # time_steps = 8
    key = jax.random.PRNGKey(0)
    k = jax.random.split(key, 7)
    scale = 1.0 / jnp.sqrt(HIDDEN)

    params = {
        "w_ih": jax.random.uniform(k[0], (4 * HIDDEN, 1), jnp.float32, -scale, scale),
        "w_hh": jax.random.uniform(k[1], (4 * HIDDEN, HIDDEN), jnp.float32, -scale, scale),
        "b_ih": jax.random.uniform(k[2], (4 * HIDDEN,), jnp.float32, -scale, scale),
        "b_hh": jax.random.uniform(k[3], (4 * HIDDEN,), jnp.float32, -scale, scale),
        "fc_w": jax.random.uniform(k[4], (T, HIDDEN), jnp.float32, -scale, scale),
        "fc_b": jax.random.uniform(k[5], (T,), jnp.float32, -scale, scale),
    }
    x = jax.random.normal(k[6], (B, T, 1), jnp.float32)

    out = jax.block_until_ready(wgan_discriminator_forward(x, params))
    ref = jax.block_until_ready(reference_forward(x, params))

    assert out.shape == (B, T, 1), out.shape
    assert jnp.allclose(out, ref, atol=1e-4, rtol=1e-4), (
        f"max abs err {jnp.max(jnp.abs(out - ref))}")
    print("KERNEL_OK")
</pallas_src>

<mosaic_0001>
module attributes {stable_mosaic.version = 11 : i64} {
  func.func @lstm_fc_kernel(%arg0: i32, %arg1: memref<8x8xf32, #tpu.memory_space<vmem>>, %arg2: memref<1x512xf32, #tpu.memory_space<vmem>>, %arg3: memref<128x512xf32, #tpu.memory_space<vmem>>, %arg4: memref<1x512xf32, #tpu.memory_space<vmem>>, %arg5: memref<8x128xf32, #tpu.memory_space<vmem>>, %arg6: memref<1x8xf32, #tpu.memory_space<vmem>>, %arg7: memref<8x8xf32, #tpu.memory_space<vmem>>, %arg8: memref<8x8x512xf32, #tpu.memory_space<vmem>>, %arg9: memref<8x8x128xf32, #tpu.memory_space<vmem>>) attributes {dimension_semantics = [#tpu.dimension_semantics<arbitrary>], iteration_bounds = array<i64: 1>, scalar_prefetch = 0 : i64, scratch_operands = 2 : i64, tpu.core_type = #tpu.core_type<tc>, window_params = [{pipeline_mode = #tpu.pipeline_mode<synchronous>, transform_indices = @transform_0, window_bounds = array<i64: 8, 8>}, {pipeline_mode = #tpu.pipeline_mode<synchronous>, transform_indices = @transform_1, window_bounds = array<i64: 1, 512>}, {pipeline_mode = #tpu.pipeline_mode<synchronous>, transform_indices = @transform_2, window_bounds = array<i64: 128, 512>}, {pipeline_mode = #tpu.pipeline_mode<synchronous>, transform_indices = @transform_3, window_bounds = array<i64: 1, 512>}, {pipeline_mode = #tpu.pipeline_mode<synchronous>, transform_indices = @transform_4, window_bounds = array<i64: 8, 128>}, {pipeline_mode = #tpu.pipeline_mode<synchronous>, transform_indices = @transform_5, window_bounds = array<i64: 1, 8>}, {pipeline_mode = #tpu.pipeline_mode<synchronous>, transform_indices = @transform_6, window_bounds = array<i64: 8, 8>}]} {
    %c0 = arith.constant 0 : index
    %c0_0 = arith.constant 0 : index
    %0 = vector.load %arg2[%c0, %c0_0] : memref<1x512xf32, #tpu.memory_space<vmem>>, vector<1x512xf32>
    %c0_1 = arith.constant 0 : index
    %c0_2 = arith.constant 0 : index
    %1 = vector.load %arg4[%c0_1, %c0_2] : memref<1x512xf32, #tpu.memory_space<vmem>>, vector<1x512xf32>
    %c0_3 = arith.constant 0 : index
    %c0_4 = arith.constant 0 : index
    %2 = vector.load %arg3[%c0_3, %c0_4] : memref<128x512xf32, #tpu.memory_space<vmem>>, vector<128x512xf32>
    %c0_5 = arith.constant 0 : index
    %c0_6 = arith.constant 0 : index
    %3 = vector.load %arg1[%c0_5, %c0_6] : memref<8x8xf32, #tpu.memory_space<vmem>>, vector<8x8xf32>
    %4 = tpu.iota {dimensions = array<i32: 1>} : vector<8x8xi32>
    %c0_i32 = arith.constant 0 : i32
    %5 = vector.broadcast %c0_i32 : i32 to vector<8x8xi32>
    %6 = arith.cmpi eq, %4, %5 : vector<8x8xi32>
    %cst = arith.constant 0.000000e+00 : f32
    %7 = vector.broadcast %cst : f32 to vector<8x8xf32>
    %8 = arith.select %6, %3, %7 : vector<8x8xi1>, vector<8x8xf32>
    %cst_7 = arith.constant dense<0.000000e+00> : vector<8xf32>
    %9 = vector.multi_reduction <add>, %8, %cst_7 [1] : vector<8x8xf32> to vector<8xf32>
    %10 = vector.shape_cast %9 : vector<8xf32> to vector<8x1xf32>
    %11 = vector.broadcast %10 : vector<8x1xf32> to vector<8x512xf32>
    %12 = vector.broadcast %0 : vector<1x512xf32> to vector<8x512xf32>
    %13 = arith.mulf %11, %12 : vector<8x512xf32>
    %14 = vector.broadcast %1 : vector<1x512xf32> to vector<8x512xf32>
    %15 = arith.addf %13, %14 : vector<8x512xf32>
    %c0_8 = arith.constant 0 : index
    %c0_9 = arith.constant 0 : index
    %c0_10 = arith.constant 0 : index
    %16 = vector.load %arg8[%c0_8, %c0_9, %c0_10] : memref<8x8x512xf32, #tpu.memory_space<vmem>>, vector<1x8x512xf32>
    %17 = vector.shape_cast %16 : vector<1x8x512xf32> to vector<8x512xf32>
    %18 = vector.shape_cast %15 : vector<8x512xf32> to vector<1x8x512xf32>
    tpu.vector_store %arg8[%c0_8, %c0_9, %c0_10], %18 {strides = array<i32>} : memref<8x8x512xf32, #tpu.memory_space<vmem>>, vector<1x8x512xf32>,
    %c1_i32 = arith.constant 1 : i32
    %19 = vector.broadcast %c1_i32 : i32 to vector<8x8xi32>
    %20 = arith.cmpi eq, %4, %19 : vector<8x8xi32>
    %cst_11 = arith.constant 0.000000e+00 : f32
    %21 = vector.broadcast %cst_11 : f32 to vector<8x8xf32>
    %22 = arith.select %20, %3, %21 : vector<8x8xi1>, vector<8x8xf32>
    %cst_12 = arith.constant dense<0.000000e+00> : vector<8xf32>
    %23 = vector.multi_reduction <add>, %22, %cst_12 [1] : vector<8x8xf32> to vector<8xf32>
    %24 = vector.shape_cast %23 : vector<8xf32> to vector<8x1xf32>
    %25 = vector.broadcast %24 : vector<8x1xf32> to vector<8x512xf32>
    %26 = vector.broadcast %0 : vector<1x512xf32> to vector<8x512xf32>
    %27 = arith.mulf %25, %26 : vector<8x512xf32>
    %28 = vector.broadcast %1 : vector<1x512xf32> to vector<8x512xf32>
    %29 = arith.addf %27, %28 : vector<8x512xf32>
    %c1 = arith.constant 1 : index
    %c0_13 = arith.constant 0 : index
    %c0_14 = arith.constant 0 : index
    %30 = vector.load %arg8[%c1, %c0_13, %c0_14] : memref<8x8x512xf32, #tpu.memory_space<vmem>>, vector<1x8x512xf32>
    %31 = vector.shape_cast %30 : vector<1x8x512xf32> to vector<8x512xf32>
    %32 = vector.shape_cast %29 : vector<8x512xf32> to vector<1x8x512xf32>
    tpu.vector_store %arg8[%c1, %c0_13, %c0_14], %32 {strides = array<i32>} : memref<8x8x512xf32, #tpu.memory_space<vmem>>, vector<1x8x512xf32>,
    %c2_i32 = arith.constant 2 : i32
    %33 = vector.broadcast %c2_i32 : i32 to vector<8x8xi32>
    %34 = arith.cmpi eq, %4, %33 : vector<8x8xi32>
    %cst_15 = arith.constant 0.000000e+00 : f32
    %35 = vector.broadcast %cst_15 : f32 to vector<8x8xf32>
    %36 = arith.select %34, %3, %35 : vector<8x8xi1>, vector<8x8xf32>
    %cst_16 = arith.constant dense<0.000000e+00> : vector<8xf32>
    %37 = vector.multi_reduction <add>, %36, %cst_16 [1] : vector<8x8xf32> to vector<8xf32>
    %38 = vector.shape_cast %37 : vector<8xf32> to vector<8x1xf32>
    %39 = vector.broadcast %38 : vector<8x1xf32> to vector<8x512xf32>
    %40 = vector.broadcast %0 : vector<1x512xf32> to vector<8x512xf32>
    %41 = arith.mulf %39, %40 : vector<8x512xf32>
    %42 = vector.broadcast %1 : vector<1x512xf32> to vector<8x512xf32>
    %43 = arith.addf %41, %42 : vector<8x512xf32>
    %c2 = arith.constant 2 : index
    %c0_17 = arith.constant 0 : index
    %c0_18 = arith.constant 0 : index
    %44 = vector.load %arg8[%c2, %c0_17, %c0_18] : memref<8x8x512xf32, #tpu.memory_space<vmem>>, vector<1x8x512xf32>
    %45 = vector.shape_cast %44 : vector<1x8x512xf32> to vector<8x512xf32>
    %46 = vector.shape_cast %43 : vector<8x512xf32> to vector<1x8x512xf32>
    tpu.vector_store %arg8[%c2, %c0_17, %c0_18], %46 {strides = array<i32>} : memref<8x8x512xf32, #tpu.memory_space<vmem>>, vector<1x8x512xf32>,
    %c3_i32 = arith.constant 3 : i32
    %47 = vector.broadcast %c3_i32 : i32 to vector<8x8xi32>
    %48 = arith.cmpi eq, %4, %47 : vector<8x8xi32>
    %cst_19 = arith.constant 0.000000e+00 : f32
    %49 = vector.broadcast %cst_19 : f32 to vector<8x8xf32>
    %50 = arith.select %48, %3, %49 : vector<8x8xi1>, vector<8x8xf32>
    %cst_20 = arith.constant dense<0.000000e+00> : vector<8xf32>
    %51 = vector.multi_reduction <add>, %50, %cst_20 [1] : vector<8x8xf32> to vector<8xf32>
    %52 = vector.shape_cast %51 : vector<8xf32> to vector<8x1xf32>
    %53 = vector.broadcast %52 : vector<8x1xf32> to vector<8x512xf32>
    %54 = vector.broadcast %0 : vector<1x512xf32> to vector<8x512xf32>
    %55 = arith.mulf %53, %54 : vector<8x512xf32>
    %56 = vector.broadcast %1 : vector<1x512xf32> to vector<8x512xf32>
    %57 = arith.addf %55, %56 : vector<8x512xf32>
    %c3 = arith.constant 3 : index
    %c0_21 = arith.constant 0 : index
    %c0_22 = arith.constant 0 : index
    %58 = vector.load %arg8[%c3, %c0_21, %c0_22] : memref<8x8x512xf32, #tpu.memory_space<vmem>>, vector<1x8x512xf32>
    %59 = vector.shape_cast %58 : vector<1x8x512xf32> to vector<8x512xf32>
    %60 = vector.shape_cast %57 : vector<8x512xf32> to vector<1x8x512xf32>
    tpu.vector_store %arg8[%c3, %c0_21, %c0_22], %60 {strides = array<i32>} : memref<8x8x512xf32, #tpu.memory_space<vmem>>, vector<1x8x512xf32>,
    %c4_i32 = arith.constant 4 : i32
    %61 = vector.broadcast %c4_i32 : i32 to vector<8x8xi32>
    %62 = arith.cmpi eq, %4, %61 : vector<8x8xi32>
    %cst_23 = arith.constant 0.000000e+00 : f32
    %63 = vector.broadcast %cst_23 : f32 to vector<8x8xf32>
    %64 = arith.select %62, %3, %63 : vector<8x8xi1>, vector<8x8xf32>
    %cst_24 = arith.constant dense<0.000000e+00> : vector<8xf32>
    %65 = vector.multi_reduction <add>, %64, %cst_24 [1] : vector<8x8xf32> to vector<8xf32>
    %66 = vector.shape_cast %65 : vector<8xf32> to vector<8x1xf32>
    %67 = vector.broadcast %66 : vector<8x1xf32> to vector<8x512xf32>
    %68 = vector.broadcast %0 : vector<1x512xf32> to vector<8x512xf32>
    %69 = arith.mulf %67, %68 : vector<8x512xf32>
    %70 = vector.broadcast %1 : vector<1x512xf32> to vector<8x512xf32>
    %71 = arith.addf %69, %70 : vector<8x512xf32>
    %c4 = arith.constant 4 : index
    %c0_25 = arith.constant 0 : index
    %c0_26 = arith.constant 0 : index
    %72 = vector.load %arg8[%c4, %c0_25, %c0_26] : memref<8x8x512xf32, #tpu.memory_space<vmem>>, vector<1x8x512xf32>
    %73 = vector.shape_cast %72 : vector<1x8x512xf32> to vector<8x512xf32>
    %74 = vector.shape_cast %71 : vector<8x512xf32> to vector<1x8x512xf32>
    tpu.vector_store %arg8[%c4, %c0_25, %c0_26], %74 {strides = array<i32>} : memref<8x8x512xf32, #tpu.memory_space<vmem>>, vector<1x8x512xf32>,
    %c5_i32 = arith.constant 5 : i32
    %75 = vector.broadcast %c5_i32 : i32 to vector<8x8xi32>
    %76 = arith.cmpi eq, %4, %75 : vector<8x8xi32>
    %cst_27 = arith.constant 0.000000e+00 : f32
    %77 = vector.broadcast %cst_27 : f32 to vector<8x8xf32>
    %78 = arith.select %76, %3, %77 : vector<8x8xi1>, vector<8x8xf32>
    %cst_28 = arith.constant dense<0.000000e+00> : vector<8xf32>
    %79 = vector.multi_reduction <add>, %78, %cst_28 [1] : vector<8x8xf32> to vector<8xf32>
    %80 = vector.shape_cast %79 : vector<8xf32> to vector<8x1xf32>
    %81 = vector.broadcast %80 : vector<8x1xf32> to vector<8x512xf32>
    %82 = vector.broadcast %0 : vector<1x512xf32> to vector<8x512xf32>
    %83 = arith.mulf %81, %82 : vector<8x512xf32>
    %84 = vector.broadcast %1 : vector<1x512xf32> to vector<8x512xf32>
    %85 = arith.addf %83, %84 : vector<8x512xf32>
    %c5 = arith.constant 5 : index
    %c0_29 = arith.constant 0 : index
    %c0_30 = arith.constant 0 : index
    %86 = vector.load %arg8[%c5, %c0_29, %c0_30] : memref<8x8x512xf32, #tpu.memory_space<vmem>>, vector<1x8x512xf32>
    %87 = vector.shape_cast %86 : vector<1x8x512xf32> to vector<8x512xf32>
    %88 = vector.shape_cast %85 : vector<8x512xf32> to vector<1x8x512xf32>
    tpu.vector_store %arg8[%c5, %c0_29, %c0_30], %88 {strides = array<i32>} : memref<8x8x512xf32, #tpu.memory_space<vmem>>, vector<1x8x512xf32>,
    %c6_i32 = arith.constant 6 : i32
    %89 = vector.broadcast %c6_i32 : i32 to vector<8x8xi32>
    %90 = arith.cmpi eq, %4, %89 : vector<8x8xi32>
    %cst_31 = arith.constant 0.000000e+00 : f32
    %91 = vector.broadcast %cst_31 : f32 to vector<8x8xf32>
    %92 = arith.select %90, %3, %91 : vector<8x8xi1>, vector<8x8xf32>
    %cst_32 = arith.constant dense<0.000000e+00> : vector<8xf32>
    %93 = vector.multi_reduction <add>, %92, %cst_32 [1] : vector<8x8xf32> to vector<8xf32>
    %94 = vector.shape_cast %93 : vector<8xf32> to vector<8x1xf32>
    %95 = vector.broadcast %94 : vector<8x1xf32> to vector<8x512xf32>
    %96 = vector.broadcast %0 : vector<1x512xf32> to vector<8x512xf32>
    %97 = arith.mulf %95, %96 : vector<8x512xf32>
    %98 = vector.broadcast %1 : vector<1x512xf32> to vector<8x512xf32>
    %99 = arith.addf %97, %98 : vector<8x512xf32>
    %c6 = arith.constant 6 : index
    %c0_33 = arith.constant 0 : index
    %c0_34 = arith.constant 0 : index
    %100 = vector.load %arg8[%c6, %c0_33, %c0_34] : memref<8x8x512xf32, #tpu.memory_space<vmem>>, vector<1x8x512xf32>
    %101 = vector.shape_cast %100 : vector<1x8x512xf32> to vector<8x512xf32>
    %102 = vector.shape_cast %99 : vector<8x512xf32> to vector<1x8x512xf32>
    tpu.vector_store %arg8[%c6, %c0_33, %c0_34], %102 {strides = array<i32>} : memref<8x8x512xf32, #tpu.memory_space<vmem>>, vector<1x8x512xf32>,
    %c7_i32 = arith.constant 7 : i32
    %103 = vector.broadcast %c7_i32 : i32 to vector<8x8xi32>
    %104 = arith.cmpi eq, %4, %103 : vector<8x8xi32>
    %cst_35 = arith.constant 0.000000e+00 : f32
    %105 = vector.broadcast %cst_35 : f32 to vector<8x8xf32>
    %106 = arith.select %104, %3, %105 : vector<8x8xi1>, vector<8x8xf32>
    %cst_36 = arith.constant dense<0.000000e+00> : vector<8xf32>
    %107 = vector.multi_reduction <add>, %106, %cst_36 [1] : vector<8x8xf32> to vector<8xf32>
    %108 = vector.shape_cast %107 : vector<8xf32> to vector<8x1xf32>
    %109 = vector.broadcast %108 : vector<8x1xf32> to vector<8x512xf32>
    %110 = vector.broadcast %0 : vector<1x512xf32> to vector<8x512xf32>
    %111 = arith.mulf %109, %110 : vector<8x512xf32>
    %112 = vector.broadcast %1 : vector<1x512xf32> to vector<8x512xf32>
    %113 = arith.addf %111, %112 : vector<8x512xf32>
    %c7 = arith.constant 7 : index
    %c0_37 = arith.constant 0 : index
    %c0_38 = arith.constant 0 : index
    %114 = vector.load %arg8[%c7, %c0_37, %c0_38] : memref<8x8x512xf32, #tpu.memory_space<vmem>>, vector<1x8x512xf32>
    %115 = vector.shape_cast %114 : vector<1x8x512xf32> to vector<8x512xf32>
    %116 = vector.shape_cast %113 : vector<8x512xf32> to vector<1x8x512xf32>
    tpu.vector_store %arg8[%c7, %c0_37, %c0_38], %116 {strides = array<i32>} : memref<8x8x512xf32, #tpu.memory_space<vmem>>, vector<1x8x512xf32>,
    %cst_39 = arith.constant 0.000000e+00 : f32
    %117 = vector.broadcast %cst_39 : f32 to vector<8x128xf32>
    %cst_40 = arith.constant 0.000000e+00 : f32
    %118 = vector.broadcast %cst_40 : f32 to vector<8x128xf32>
    %c0_41 = arith.constant 0 : index
    %c0_42 = arith.constant 0 : index
    %c0_43 = arith.constant 0 : index
    %119 = vector.load %arg8[%c0_41, %c0_42, %c0_43] : memref<8x8x512xf32, #tpu.memory_space<vmem>>, vector<1x8x512xf32>
    %120 = vector.shape_cast %119 : vector<1x8x512xf32> to vector<8x512xf32>
    %cst_44 = arith.constant dense<0.000000e+00> : vector<8x512xf32>
    %121 = tpu.matmul %117, %2, %cst_44 {dimension_numbers = #tpu.dot_dimension_numbers<[1], [0], [0], [1], [0, 0, 1, 1], [], []>} : vector<8x128xf32>, vector<128x512xf32>, vector<8x512xf32> -> vector<8x512xf32>
    %122 = arith.addf %120, %121 : vector<8x512xf32>
    %123 = vector.extract_strided_slice %122 {offsets = [0, 0], sizes = [8, 128], strides = [1, 1]} : vector<8x512xf32> to vector<8x128xf32>
    %124 = arith.negf %123 : vector<8x128xf32>
    %125 = math.exp %124 : vector<8x128xf32>
    %cst_45 = arith.constant 1.000000e+00 : f32
    %126 = vector.broadcast %cst_45 : f32 to vector<8x128xf32>
    %127 = arith.addf %126, %125 : vector<8x128xf32>
    %128 = arith.divf %126, %127 : vector<8x128xf32>
    %129 = vector.extract_strided_slice %122 {offsets = [0, 128], sizes = [8, 128], strides = [1, 1]} : vector<8x512xf32> to vector<8x128xf32>
    %130 = arith.negf %129 : vector<8x128xf32>
    %131 = math.exp %130 : vector<8x128xf32>
    %cst_46 = arith.constant 1.000000e+00 : f32
    %132 = vector.broadcast %cst_46 : f32 to vector<8x128xf32>
    %133 = arith.addf %132, %131 : vector<8x128xf32>
    %134 = arith.divf %132, %133 : vector<8x128xf32>
    %135 = vector.extract_strided_slice %122 {offsets = [0, 256], sizes = [8, 128], strides = [1, 1]} : vector<8x512xf32> to vector<8x128xf32>
    %136 = math.tanh %135 : vector<8x128xf32>
    %137 = vector.extract_strided_slice %122 {offsets = [0, 384], sizes = [8, 128], strides = [1, 1]} : vector<8x512xf32> to vector<8x128xf32>
    %138 = arith.negf %137 : vector<8x128xf32>
    %139 = math.exp %138 : vector<8x128xf32>
    %cst_47 = arith.constant 1.000000e+00 : f32
    %140 = vector.broadcast %cst_47 : f32 to vector<8x128xf32>
    %141 = arith.addf %140, %139 : vector<8x128xf32>
    %142 = arith.divf %140, %141 : vector<8x128xf32>
    %143 = arith.mulf %134, %118 : vector<8x128xf32>
    %144 = arith.mulf %128, %136 : vector<8x128xf32>
    %145 = arith.addf %143, %144 : vector<8x128xf32>
    %146 = math.tanh %145 : vector<8x128xf32>
    %147 = arith.mulf %142, %146 : vector<8x128xf32>
    %c0_48 = arith.constant 0 : index
    %c0_49 = arith.constant 0 : index
    %c0_50 = arith.constant 0 : index
    %148 = vector.load %arg9[%c0_48, %c0_49, %c0_50] : memref<8x8x128xf32, #tpu.memory_space<vmem>>, vector<1x8x128xf32>
    %149 = vector.shape_cast %148 : vector<1x8x128xf32> to vector<8x128xf32>
    %150 = vector.shape_cast %147 : vector<8x128xf32> to vector<1x8x128xf32>
    tpu.vector_store %arg9[%c0_48, %c0_49, %c0_50], %150 {strides = array<i32>} : memref<8x8x128xf32, #tpu.memory_space<vmem>>, vector<1x8x128xf32>,
    %c1_51 = arith.constant 1 : index
    %c0_52 = arith.constant 0 : index
    %c0_53 = arith.constant 0 : index
    %151 = vector.load %arg8[%c1_51, %c0_52, %c0_53] : memref<8x8x512xf32, #tpu.memory_space<vmem>>, vector<1x8x512xf32>
    %152 = vector.shape_cast %151 : vector<1x8x512xf32> to vector<8x512xf32>
    %cst_54 = arith.constant dense<0.000000e+00> : vector<8x512xf32>
    %153 = tpu.matmul %147, %2, %cst_54 {dimension_numbers = #tpu.dot_dimension_numbers<[1], [0], [0], [1], [0, 0, 1, 1], [], []>} : vector<8x128xf32>, vector<128x512xf32>, vector<8x512xf32> -> vector<8x512xf32>
    %154 = arith.addf %152, %153 : vector<8x512xf32>
    %155 = vector.extract_strided_slice %154 {offsets = [0, 0], sizes = [8, 128], strides = [1, 1]} : vector<8x512xf32> to vector<8x128xf32>
    %156 = arith.negf %155 : vector<8x128xf32>
    %157 = math.exp %156 : vector<8x128xf32>
    %cst_55 = arith.constant 1.000000e+00 : f32
    %158 = vector.broadcast %cst_55 : f32 to vector<8x128xf32>
    %159 = arith.addf %158, %157 : vector<8x128xf32>
    %160 = arith.divf %158, %159 : vector<8x128xf32>
    %161 = vector.extract_strided_slice %154 {offsets = [0, 128], sizes = [8, 128], strides = [1, 1]} : vector<8x512xf32> to vector<8x128xf32>
    %162 = arith.negf %161 : vector<8x128xf32>
    %163 = math.exp %162 : vector<8x128xf32>
    %cst_56 = arith.constant 1.000000e+00 : f32
    %164 = vector.broadcast %cst_56 : f32 to vector<8x128xf32>
    %165 = arith.addf %164, %163 : vector<8x128xf32>
    %166 = arith.divf %164, %165 : vector<8x128xf32>
    %167 = vector.extract_strided_slice %154 {offsets = [0, 256], sizes = [8, 128], strides = [1, 1]} : vector<8x512xf32> to vector<8x128xf32>
    %168 = math.tanh %167 : vector<8x128xf32>
    %169 = vector.extract_strided_slice %154 {offsets = [0, 384], sizes = [8, 128], strides = [1, 1]} : vector<8x512xf32> to vector<8x128xf32>
    %170 = arith.negf %169 : vector<8x128xf32>
    %171 = math.exp %170 : vector<8x128xf32>
    %cst_57 = arith.constant 1.000000e+00 : f32
    %172 = vector.broadcast %cst_57 : f32 to vector<8x128xf32>
    %173 = arith.addf %172, %171 : vector<8x128xf32>
    %174 = arith.divf %172, %173 : vector<8x128xf32>
    %175 = arith.mulf %166, %145 : vector<8x128xf32>
    %176 = arith.mulf %160, %168 : vector<8x128xf32>
    %177 = arith.addf %175, %176 : vector<8x128xf32>
    %178 = math.tanh %177 : vector<8x128xf32>
    %179 = arith.mulf %174, %178 : vector<8x128xf32>
    %c1_58 = arith.constant 1 : index
    %c0_59 = arith.constant 0 : index
    %c0_60 = arith.constant 0 : index
    %180 = vector.load %arg9[%c1_58, %c0_59, %c0_60] : memref<8x8x128xf32, #tpu.memory_space<vmem>>, vector<1x8x128xf32>
    %181 = vector.shape_cast %180 : vector<1x8x128xf32> to vector<8x128xf32>
    %182 = vector.shape_cast %179 : vector<8x128xf32> to vector<1x8x128xf32>
    tpu.vector_store %arg9[%c1_58, %c0_59, %c0_60], %182 {strides = array<i32>} : memref<8x8x128xf32, #tpu.memory_space<vmem>>, vector<1x8x128xf32>,
    %c2_61 = arith.constant 2 : index
    %c0_62 = arith.constant 0 : index
    %c0_63 = arith.constant 0 : index
    %183 = vector.load %arg8[%c2_61, %c0_62, %c0_63] : memref<8x8x512xf32, #tpu.memory_space<vmem>>, vector<1x8x512xf32>
    %184 = vector.shape_cast %183 : vector<1x8x512xf32> to vector<8x512xf32>
    %cst_64 = arith.constant dense<0.000000e+00> : vector<8x512xf32>
    %185 = tpu.matmul %179, %2, %cst_64 {dimension_numbers = #tpu.dot_dimension_numbers<[1], [0], [0], [1], [0, 0, 1, 1], [], []>} : vector<8x128xf32>, vector<128x512xf32>, vector<8x512xf32> -> vector<8x512xf32>
    %186 = arith.addf %184, %185 : vector<8x512xf32>
    %187 = vector.extract_strided_slice %186 {offsets = [0, 0], sizes = [8, 128], strides = [1, 1]} : vector<8x512xf32> to vector<8x128xf32>
    %188 = arith.negf %187 : vector<8x128xf32>
    %189 = math.exp %188 : vector<8x128xf32>
    %cst_65 = arith.constant 1.000000e+00 : f32
    %190 = vector.broadcast %cst_65 : f32 to vector<8x128xf32>
    %191 = arith.addf %190, %189 : vector<8x128xf32>
    %192 = arith.divf %190, %191 : vector<8x128xf32>
    %193 = vector.extract_strided_slice %186 {offsets = [0, 128], sizes = [8, 128], strides = [1, 1]} : vector<8x512xf32> to vector<8x128xf32>
    %194 = arith.negf %193 : vector<8x128xf32>
    %195 = math.exp %194 : vector<8x128xf32>
    %cst_66 = arith.constant 1.000000e+00 : f32
    %196 = vector.broadcast %cst_66 : f32 to vector<8x128xf32>
    %197 = arith.addf %196, %195 : vector<8x128xf32>
    %198 = arith.divf %196, %197 : vector<8x128xf32>
    %199 = vector.extract_strided_slice %186 {offsets = [0, 256], sizes = [8, 128], strides = [1, 1]} : vector<8x512xf32> to vector<8x128xf32>
    %200 = math.tanh %199 : vector<8x128xf32>
    %201 = vector.extract_strided_slice %186 {offsets = [0, 384], sizes = [8, 128], strides = [1, 1]} : vector<8x512xf32> to vector<8x128xf32>
    %202 = arith.negf %201 : vector<8x128xf32>
    %203 = math.exp %202 : vector<8x128xf32>
    %cst_67 = arith.constant 1.000000e+00 : f32
    %204 = vector.broadcast %cst_67 : f32 to vector<8x128xf32>
    %205 = arith.addf %204, %203 : vector<8x128xf32>
    %206 = arith.divf %204, %205 : vector<8x128xf32>
    %207 = arith.mulf %198, %177 : vector<8x128xf32>
    %208 = arith.mulf %192, %200 : vector<8x128xf32>
    %209 = arith.addf %207, %208 : vector<8x128xf32>
    %210 = math.tanh %209 : vector<8x128xf32>
    %211 = arith.mulf %206, %210 : vector<8x128xf32>
    %c2_68 = arith.constant 2 : index
    %c0_69 = arith.constant 0 : index
    %c0_70 = arith.constant 0 : index
    %212 = vector.load %arg9[%c2_68, %c0_69, %c0_70] : memref<8x8x128xf32, #tpu.memory_space<vmem>>, vector<1x8x128xf32>
    %213 = vector.shape_cast %212 : vector<1x8x128xf32> to vector<8x128xf32>
    %214 = vector.shape_cast %211 : vector<8x128xf32> to vector<1x8x128xf32>
    tpu.vector_store %arg9[%c2_68, %c0_69, %c0_70], %214 {strides = array<i32>} : memref<8x8x128xf32, #tpu.memory_space<vmem>>, vector<1x8x128xf32>,
    %c3_71 = arith.constant 3 : index
    %c0_72 = arith.constant 0 : index
    %c0_73 = arith.constant 0 : index
    %215 = vector.load %arg8[%c3_71, %c0_72, %c0_73] : memref<8x8x512xf32, #tpu.memory_space<vmem>>, vector<1x8x512xf32>
    %216 = vector.shape_cast %215 : vector<1x8x512xf32> to vector<8x512xf32>
    %cst_74 = arith.constant dense<0.000000e+00> : vector<8x512xf32>
    %217 = tpu.matmul %211, %2, %cst_74 {dimension_numbers = #tpu.dot_dimension_numbers<[1], [0], [0], [1], [0, 0, 1, 1], [], []>} : vector<8x128xf32>, vector<128x512xf32>, vector<8x512xf32> -> vector<8x512xf32>
    %218 = arith.addf %216, %217 : vector<8x512xf32>
    %219 = vector.extract_strided_slice %218 {offsets = [0, 0], sizes = [8, 128], strides = [1, 1]} : vector<8x512xf32> to vector<8x128xf32>
    %220 = arith.negf %219 : vector<8x128xf32>
    %221 = math.exp %220 : vector<8x128xf32>
    %cst_75 = arith.constant 1.000000e+00 : f32
    %222 = vector.broadcast %cst_75 : f32 to vector<8x128xf32>
    %223 = arith.addf %222, %221 : vector<8x128xf32>
    %224 = arith.divf %222, %223 : vector<8x128xf32>
    %225 = vector.extract_strided_slice %218 {offsets = [0, 128], sizes = [8, 128], strides = [1, 1]} : vector<8x512xf32> to vector<8x128xf32>
    %226 = arith.negf %225 : vector<8x128xf32>
    %227 = math.exp %226 : vector<8x128xf32>
    %cst_76 = arith.constant 1.000000e+00 : f32
    %228 = vector.broadcast %cst_76 : f32 to vector<8x128xf32>
    %229 = arith.addf %228, %227 : vector<8x128xf32>
    %230 = arith.divf %228, %229 : vector<8x128xf32>
    %231 = vector.extract_strided_slice %218 {offsets = [0, 256], sizes = [8, 128], strides = [1, 1]} : vector<8x512xf32> to vector<8x128xf32>
    %232 = math.tanh %231 : vector<8x128xf32>
    %233 = vector.extract_strided_slice %218 {offsets = [0, 384], sizes = [8, 128], strides = [1, 1]} : vector<8x512xf32> to vector<8x128xf32>
    %234 = arith.negf %233 : vector<8x128xf32>
    %235 = math.exp %234 : vector<8x128xf32>
    %cst_77 = arith.constant 1.000000e+00 : f32
    %236 = vector.broadcast %cst_77 : f32 to vector<8x128xf32>
    %237 = arith.addf %236, %235 : vector<8x128xf32>
    %238 = arith.divf %236, %237 : vector<8x128xf32>
    %239 = arith.mulf %230, %209 : vector<8x128xf32>
    %240 = arith.mulf %224, %232 : vector<8x128xf32>
    %241 = arith.addf %239, %240 : vector<8x128xf32>
    %242 = math.tanh %241 : vector<8x128xf32>
    %243 = arith.mulf %238, %242 : vector<8x128xf32>
    %c3_78 = arith.constant 3 : index
    %c0_79 = arith.constant 0 : index
    %c0_80 = arith.constant 0 : index
    %244 = vector.load %arg9[%c3_78, %c0_79, %c0_80] : memref<8x8x128xf32, #tpu.memory_space<vmem>>, vector<1x8x128xf32>
    %245 = vector.shape_cast %244 : vector<1x8x128xf32> to vector<8x128xf32>
    %246 = vector.shape_cast %243 : vector<8x128xf32> to vector<1x8x128xf32>
    tpu.vector_store %arg9[%c3_78, %c0_79, %c0_80], %246 {strides = array<i32>} : memref<8x8x128xf32, #tpu.memory_space<vmem>>, vector<1x8x128xf32>,
    %c4_81 = arith.constant 4 : index
    %c0_82 = arith.constant 0 : index
    %c0_83 = arith.constant 0 : index
    %247 = vector.load %arg8[%c4_81, %c0_82, %c0_83] : memref<8x8x512xf32, #tpu.memory_space<vmem>>, vector<1x8x512xf32>
    %248 = vector.shape_cast %247 : vector<1x8x512xf32> to vector<8x512xf32>
    %cst_84 = arith.constant dense<0.000000e+00> : vector<8x512xf32>
    %249 = tpu.matmul %243, %2, %cst_84 {dimension_numbers = #tpu.dot_dimension_numbers<[1], [0], [0], [1], [0, 0, 1, 1], [], []>} : vector<8x128xf32>, vector<128x512xf32>, vector<8x512xf32> -> vector<8x512xf32>
    %250 = arith.addf %248, %249 : vector<8x512xf32>
    %251 = vector.extract_strided_slice %250 {offsets = [0, 0], sizes = [8, 128], strides = [1, 1]} : vector<8x512xf32> to vector<8x128xf32>
    %252 = arith.negf %251 : vector<8x128xf32>
    %253 = math.exp %252 : vector<8x128xf32>
    %cst_85 = arith.constant 1.000000e+00 : f32
    %254 = vector.broadcast %cst_85 : f32 to vector<8x128xf32>
    %255 = arith.addf %254, %253 : vector<8x128xf32>
    %256 = arith.divf %254, %255 : vector<8x128xf32>
    %257 = vector.extract_strided_slice %250 {offsets = [0, 128], sizes = [8, 128], strides = [1, 1]} : vector<8x512xf32> to vector<8x128xf32>
    %258 = arith.negf %257 : vector<8x128xf32>
    %259 = math.exp %258 : vector<8x128xf32>
    %cst_86 = arith.constant 1.000000e+00 : f32
    %260 = vector.broadcast %cst_86 : f32 to vector<8x128xf32>
    %261 = arith.addf %260, %259 : vector<8x128xf32>
    %262 = arith.divf %260, %261 : vector<8x128xf32>
    %263 = vector.extract_strided_slice %250 {offsets = [0, 256], sizes = [8, 128], strides = [1, 1]} : vector<8x512xf32> to vector<8x128xf32>
    %264 = math.tanh %263 : vector<8x128xf32>
    %265 = vector.extract_strided_slice %250 {offsets = [0, 384], sizes = [8, 128], strides = [1, 1]} : vector<8x512xf32> to vector<8x128xf32>
    %266 = arith.negf %265 : vector<8x128xf32>
    %267 = math.exp %266 : vector<8x128xf32>
    %cst_87 = arith.constant 1.000000e+00 : f32
    %268 = vector.broadcast %cst_87 : f32 to vector<8x128xf32>
    %269 = arith.addf %268, %267 : vector<8x128xf32>
    %270 = arith.divf %268, %269 : vector<8x128xf32>
    %271 = arith.mulf %262, %241 : vector<8x128xf32>
    %272 = arith.mulf %256, %264 : vector<8x128xf32>
    %273 = arith.addf %271, %272 : vector<8x128xf32>
    %274 = math.tanh %273 : vector<8x128xf32>
    %275 = arith.mulf %270, %274 : vector<8x128xf32>
    %c4_88 = arith.constant 4 : index
    %c0_89 = arith.constant 0 : index
    %c0_90 = arith.constant 0 : index
    %276 = vector.load %arg9[%c4_88, %c0_89, %c0_90] : memref<8x8x128xf32, #tpu.memory_space<vmem>>, vector<1x8x128xf32>
    %277 = vector.shape_cast %276 : vector<1x8x128xf32> to vector<8x128xf32>
    %278 = vector.shape_cast %275 : vector<8x128xf32> to vector<1x8x128xf32>
    tpu.vector_store %arg9[%c4_88, %c0_89, %c0_90], %278 {strides = array<i32>} : memref<8x8x128xf32, #tpu.memory_space<vmem>>, vector<1x8x128xf32>,
    %c5_91 = arith.constant 5 : index
    %c0_92 = arith.constant 0 : index
    %c0_93 = arith.constant 0 : index
    %279 = vector.load %arg8[%c5_91, %c0_92, %c0_93] : memref<8x8x512xf32, #tpu.memory_space<vmem>>, vector<1x8x512xf32>
    %280 = vector.shape_cast %279 : vector<1x8x512xf32> to vector<8x512xf32>
    %cst_94 = arith.constant dense<0.000000e+00> : vector<8x512xf32>
    %281 = tpu.matmul %275, %2, %cst_94 {dimension_numbers = #tpu.dot_dimension_numbers<[1], [0], [0], [1], [0, 0, 1, 1], [], []>} : vector<8x128xf32>, vector<128x512xf32>, vector<8x512xf32> -> vector<8x512xf32>
    %282 = arith.addf %280, %281 : vector<8x512xf32>
    %283 = vector.extract_strided_slice %282 {offsets = [0, 0], sizes = [8, 128], strides = [1, 1]} : vector<8x512xf32> to vector<8x128xf32>
    %284 = arith.negf %283 : vector<8x128xf32>
    %285 = math.exp %284 : vector<8x128xf32>
    %cst_95 = arith.constant 1.000000e+00 : f32
    %286 = vector.broadcast %cst_95 : f32 to vector<8x128xf32>
    %287 = arith.addf %286, %285 : vector<8x128xf32>
    %288 = arith.divf %286, %287 : vector<8x128xf32>
    %289 = vector.extract_strided_slice %282 {offsets = [0, 128], sizes = [8, 128], strides = [1, 1]} : vector<8x512xf32> to vector<8x128xf32>
    %290 = arith.negf %289 : vector<8x128xf32>
    %291 = math.exp %290 : vector<8x128xf32>
    %cst_96 = arith.constant 1.000000e+00 : f32
    %292 = vector.broadcast %cst_96 : f32 to vector<8x128xf32>
    %293 = arith.addf %292, %291 : vector<8x128xf32>
    %294 = arith.divf %292, %293 : vector<8x128xf32>
    %295 = vector.extract_strided_slice %282 {offsets = [0, 256], sizes = [8, 128], strides = [1, 1]} : vector<8x512xf32> to vector<8x128xf32>
    %296 = math.tanh %295 : vector<8x128xf32>
    %297 = vector.extract_strided_slice %282 {offsets = [0, 384], sizes = [8, 128], strides = [1, 1]} : vector<8x512xf32> to vector<8x128xf32>
    %298 = arith.negf %297 : vector<8x128xf32>
    %299 = math.exp %298 : vector<8x128xf32>
    %cst_97 = arith.constant 1.000000e+00 : f32
    %300 = vector.broadcast %cst_97 : f32 to vector<8x128xf32>
    %301 = arith.addf %300, %299 : vector<8x128xf32>
    %302 = arith.divf %300, %301 : vector<8x128xf32>
    %303 = arith.mulf %294, %273 : vector<8x128xf32>
    %304 = arith.mulf %288, %296 : vector<8x128xf32>
    %305 = arith.addf %303, %304 : vector<8x128xf32>
    %306 = math.tanh %305 : vector<8x128xf32>
    %307 = arith.mulf %302, %306 : vector<8x128xf32>
    %c5_98 = arith.constant 5 : index
    %c0_99 = arith.constant 0 : index
    %c0_100 = arith.constant 0 : index
    %308 = vector.load %arg9[%c5_98, %c0_99, %c0_100] : memref<8x8x128xf32, #tpu.memory_space<vmem>>, vector<1x8x128xf32>
    %309 = vector.shape_cast %308 : vector<1x8x128xf32> to vector<8x128xf32>
    %310 = vector.shape_cast %307 : vector<8x128xf32> to vector<1x8x128xf32>
    tpu.vector_store %arg9[%c5_98, %c0_99, %c0_100], %310 {strides = array<i32>} : memref<8x8x128xf32, #tpu.memory_space<vmem>>, vector<1x8x128xf32>,
    %c6_101 = arith.constant 6 : index
    %c0_102 = arith.constant 0 : index
    %c0_103 = arith.constant 0 : index
    %311 = vector.load %arg8[%c6_101, %c0_102, %c0_103] : memref<8x8x512xf32, #tpu.memory_space<vmem>>, vector<1x8x512xf32>
    %312 = vector.shape_cast %311 : vector<1x8x512xf32> to vector<8x512xf32>
    %cst_104 = arith.constant dense<0.000000e+00> : vector<8x512xf32>
    %313 = tpu.matmul %307, %2, %cst_104 {dimension_numbers = #tpu.dot_dimension_numbers<[1], [0], [0], [1], [0, 0, 1, 1], [], []>} : vector<8x128xf32>, vector<128x512xf32>, vector<8x512xf32> -> vector<8x512xf32>
    %314 = arith.addf %312, %313 : vector<8x512xf32>
    %315 = vector.extract_strided_slice %314 {offsets = [0, 0], sizes = [8, 128], strides = [1, 1]} : vector<8x512xf32> to vector<8x128xf32>
    %316 = arith.negf %315 : vector<8x128xf32>
    %317 = math.exp %316 : vector<8x128xf32>
    %cst_105 = arith.constant 1.000000e+00 : f32
    %318 = vector.broadcast %cst_105 : f32 to vector<8x128xf32>
    %319 = arith.addf %318, %317 : vector<8x128xf32>
    %320 = arith.divf %318, %319 : vector<8x128xf32>
    %321 = vector.extract_strided_slice %314 {offsets = [0, 128], sizes = [8, 128], strides = [1, 1]} : vector<8x512xf32> to vector<8x128xf32>
    %322 = arith.negf %321 : vector<8x128xf32>
    %323 = math.exp %322 : vector<8x128xf32>
    %cst_106 = arith.constant 1.000000e+00 : f32
    %324 = vector.broadcast %cst_106 : f32 to vector<8x128xf32>
    %325 = arith.addf %324, %323 : vector<8x128xf32>
    %326 = arith.divf %324, %325 : vector<8x128xf32>
    %327 = vector.extract_strided_slice %314 {offsets = [0, 256], sizes = [8, 128], strides = [1, 1]} : vector<8x512xf32> to vector<8x128xf32>
    %328 = math.tanh %327 : vector<8x128xf32>
    %329 = vector.extract_strided_slice %314 {offsets = [0, 384], sizes = [8, 128], strides = [1, 1]} : vector<8x512xf32> to vector<8x128xf32>
    %330 = arith.negf %329 : vector<8x128xf32>
    %331 = math.exp %330 : vector<8x128xf32>
    %cst_107 = arith.constant 1.000000e+00 : f32
    %332 = vector.broadcast %cst_107 : f32 to vector<8x128xf32>
    %333 = arith.addf %332, %331 : vector<8x128xf32>
    %334 = arith.divf %332, %333 : vector<8x128xf32>
    %335 = arith.mulf %326, %305 : vector<8x128xf32>
    %336 = arith.mulf %320, %328 : vector<8x128xf32>
    %337 = arith.addf %335, %336 : vector<8x128xf32>
    %338 = math.tanh %337 : vector<8x128xf32>
    %339 = arith.mulf %334, %338 : vector<8x128xf32>
    %c6_108 = arith.constant 6 : index
    %c0_109 = arith.constant 0 : index
    %c0_110 = arith.constant 0 : index
    %340 = vector.load %arg9[%c6_108, %c0_109, %c0_110] : memref<8x8x128xf32, #tpu.memory_space<vmem>>, vector<1x8x128xf32>
    %341 = vector.shape_cast %340 : vector<1x8x128xf32> to vector<8x128xf32>
    %342 = vector.shape_cast %339 : vector<8x128xf32> to vector<1x8x128xf32>
    tpu.vector_store %arg9[%c6_108, %c0_109, %c0_110], %342 {strides = array<i32>} : memref<8x8x128xf32, #tpu.memory_space<vmem>>, vector<1x8x128xf32>,
    %c7_111 = arith.constant 7 : index
    %c0_112 = arith.constant 0 : index
    %c0_113 = arith.constant 0 : index
    %343 = vector.load %arg8[%c7_111, %c0_112, %c0_113] : memref<8x8x512xf32, #tpu.memory_space<vmem>>, vector<1x8x512xf32>
    %344 = vector.shape_cast %343 : vector<1x8x512xf32> to vector<8x512xf32>
    %cst_114 = arith.constant dense<0.000000e+00> : vector<8x512xf32>
    %345 = tpu.matmul %339, %2, %cst_114 {dimension_numbers = #tpu.dot_dimension_numbers<[1], [0], [0], [1], [0, 0, 1, 1], [], []>} : vector<8x128xf32>, vector<128x512xf32>, vector<8x512xf32> -> vector<8x512xf32>
    %346 = arith.addf %344, %345 : vector<8x512xf32>
    %347 = vector.extract_strided_slice %346 {offsets = [0, 0], sizes = [8, 128], strides = [1, 1]} : vector<8x512xf32> to vector<8x128xf32>
    %348 = arith.negf %347 : vector<8x128xf32>
    %349 = math.exp %348 : vector<8x128xf32>
    %cst_115 = arith.constant 1.000000e+00 : f32
    %350 = vector.broadcast %cst_115 : f32 to vector<8x128xf32>
    %351 = arith.addf %350, %349 : vector<8x128xf32>
    %352 = arith.divf %350, %351 : vector<8x128xf32>
    %353 = vector.extract_strided_slice %346 {offsets = [0, 128], sizes = [8, 128], strides = [1, 1]} : vector<8x512xf32> to vector<8x128xf32>
    %354 = arith.negf %353 : vector<8x128xf32>
    %355 = math.exp %354 : vector<8x128xf32>
    %cst_116 = arith.constant 1.000000e+00 : f32
    %356 = vector.broadcast %cst_116 : f32 to vector<8x128xf32>
    %357 = arith.addf %356, %355 : vector<8x128xf32>
    %358 = arith.divf %356, %357 : vector<8x128xf32>
    %359 = vector.extract_strided_slice %346 {offsets = [0, 256], sizes = [8, 128], strides = [1, 1]} : vector<8x512xf32> to vector<8x128xf32>
    %360 = math.tanh %359 : vector<8x128xf32>
    %361 = vector.extract_strided_slice %346 {offsets = [0, 384], sizes = [8, 128], strides = [1, 1]} : vector<8x512xf32> to vector<8x128xf32>
    %362 = arith.negf %361 : vector<8x128xf32>
    %363 = math.exp %362 : vector<8x128xf32>
    %cst_117 = arith.constant 1.000000e+00 : f32
    %364 = vector.broadcast %cst_117 : f32 to vector<8x128xf32>
    %365 = arith.addf %364, %363 : vector<8x128xf32>
    %366 = arith.divf %364, %365 : vector<8x128xf32>
    %367 = arith.mulf %358, %337 : vector<8x128xf32>
    %368 = arith.mulf %352, %360 : vector<8x128xf32>
    %369 = arith.addf %367, %368 : vector<8x128xf32>
    %370 = math.tanh %369 : vector<8x128xf32>
    %371 = arith.mulf %366, %370 : vector<8x128xf32>
    %c7_118 = arith.constant 7 : index
    %c0_119 = arith.constant 0 : index
    %c0_120 = arith.constant 0 : index
    %372 = vector.load %arg9[%c7_118, %c0_119, %c0_120] : memref<8x8x128xf32, #tpu.memory_space<vmem>>, vector<1x8x128xf32>
    %373 = vector.shape_cast %372 : vector<1x8x128xf32> to vector<8x128xf32>
    %374 = vector.shape_cast %371 : vector<8x128xf32> to vector<1x8x128xf32>
    tpu.vector_store %arg9[%c7_118, %c0_119, %c0_120], %374 {strides = array<i32>} : memref<8x8x128xf32, #tpu.memory_space<vmem>>, vector<1x8x128xf32>,
    %cst_121 = arith.constant 0.000000e+00 : f32
    %375 = vector.broadcast %cst_121 : f32 to vector<8x8xf32>
    %c0_122 = arith.constant 0 : index
    %c0_123 = arith.constant 0 : index
    %c0_124 = arith.constant 0 : index
    %376 = vector.load %arg9[%c0_122, %c0_123, %c0_124] : memref<8x8x128xf32, #tpu.memory_space<vmem>>, vector<1x8x128xf32>
    %377 = vector.shape_cast %376 : vector<1x8x128xf32> to vector<8x128xf32>
    %c0_125 = arith.constant 0 : index
    %c0_126 = arith.constant 0 : index
    %378 = vector.load %arg5[%c0_125, %c0_126] : memref<8x128xf32, #tpu.memory_space<vmem>>, vector<1x128xf32>
    %379 = vector.broadcast %378 : vector<1x128xf32> to vector<8x128xf32>
    %380 = arith.mulf %377, %379 : vector<8x128xf32>
    %cst_127 = arith.constant dense<0.000000e+00> : vector<8xf32>
    %381 = vector.multi_reduction <add>, %380, %cst_127 [1] : vector<8x128xf32> to vector<8xf32>
    %382 = vector.shape_cast %381 : vector<8xf32> to vector<8x1xf32>
    %c0_i32_128 = arith.constant 0 : i32
    %383 = vector.broadcast %c0_i32_128 : i32 to vector<8x8xi32>
    %384 = arith.cmpi eq, %4, %383 : vector<8x8xi32>
    %385 = vector.shape_cast %382 : vector<8x1xf32> to vector<8x1xf32>
    %386 = vector.broadcast %385 : vector<8x1xf32> to vector<8x8xf32>
    %387 = arith.select %384, %386, %375 : vector<8x8xi1>, vector<8x8xf32>
    %c1_129 = arith.constant 1 : index
    %c0_130 = arith.constant 0 : index
    %c0_131 = arith.constant 0 : index
    %388 = vector.load %arg9[%c1_129, %c0_130, %c0_131] : memref<8x8x128xf32, #tpu.memory_space<vmem>>, vector<1x8x128xf32>
    %389 = vector.shape_cast %388 : vector<1x8x128xf32> to vector<8x128xf32>
    %c1_132 = arith.constant 1 : index
    %c0_133 = arith.constant 0 : index
    %390 = vector.load %arg5[%c1_132, %c0_133] : memref<8x128xf32, #tpu.memory_space<vmem>>, vector<1x128xf32>
    %391 = vector.broadcast %390 : vector<1x128xf32> to vector<8x128xf32>
    %392 = arith.mulf %389, %391 : vector<8x128xf32>
    %cst_134 = arith.constant dense<0.000000e+00> : vector<8xf32>
    %393 = vector.multi_reduction <add>, %392, %cst_134 [1] : vector<8x128xf32> to vector<8xf32>
    %394 = vector.shape_cast %393 : vector<8xf32> to vector<8x1xf32>
    %c1_i32_135 = arith.constant 1 : i32
    %395 = vector.broadcast %c1_i32_135 : i32 to vector<8x8xi32>
    %396 = arith.cmpi eq, %4, %395 : vector<8x8xi32>
    %397 = vector.shape_cast %394 : vector<8x1xf32> to vector<8x1xf32>
    %398 = vector.broadcast %397 : vector<8x1xf32> to vector<8x8xf32>
    %399 = arith.select %396, %398, %387 : vector<8x8xi1>, vector<8x8xf32>
    %c2_136 = arith.constant 2 : index
    %c0_137 = arith.constant 0 : index
    %c0_138 = arith.constant 0 : index
    %400 = vector.load %arg9[%c2_136, %c0_137, %c0_138] : memref<8x8x128xf32, #tpu.memory_space<vmem>>, vector<1x8x128xf32>
    %401 = vector.shape_cast %400 : vector<1x8x128xf32> to vector<8x128xf32>
    %c2_139 = arith.constant 2 : index
    %c0_140 = arith.constant 0 : index
    %402 = vector.load %arg5[%c2_139, %c0_140] : memref<8x128xf32, #tpu.memory_space<vmem>>, vector<1x128xf32>
    %403 = vector.broadcast %402 : vector<1x128xf32> to vector<8x128xf32>
    %404 = arith.mulf %401, %403 : vector<8x128xf32>
    %cst_141 = arith.constant dense<0.000000e+00> : vector<8xf32>
    %405 = vector.multi_reduction <add>, %404, %cst_141 [1] : vector<8x128xf32> to vector<8xf32>
    %406 = vector.shape_cast %405 : vector<8xf32> to vector<8x1xf32>
    %c2_i32_142 = arith.constant 2 : i32
    %407 = vector.broadcast %c2_i32_142 : i32 to vector<8x8xi32>
    %408 = arith.cmpi eq, %4, %407 : vector<8x8xi32>
    %409 = vector.shape_cast %406 : vector<8x1xf32> to vector<8x1xf32>
    %410 = vector.broadcast %409 : vector<8x1xf32> to vector<8x8xf32>
    %411 = arith.select %408, %410, %399 : vector<8x8xi1>, vector<8x8xf32>
    %c3_143 = arith.constant 3 : index
    %c0_144 = arith.constant 0 : index
    %c0_145 = arith.constant 0 : index
    %412 = vector.load %arg9[%c3_143, %c0_144, %c0_145] : memref<8x8x128xf32, #tpu.memory_space<vmem>>, vector<1x8x128xf32>
    %413 = vector.shape_cast %412 : vector<1x8x128xf32> to vector<8x128xf32>
    %c3_146 = arith.constant 3 : index
    %c0_147 = arith.constant 0 : index
    %414 = vector.load %arg5[%c3_146, %c0_147] : memref<8x128xf32, #tpu.memory_space<vmem>>, vector<1x128xf32>
    %415 = vector.broadcast %414 : vector<1x128xf32> to vector<8x128xf32>
    %416 = arith.mulf %413, %415 : vector<8x128xf32>
    %cst_148 = arith.constant dense<0.000000e+00> : vector<8xf32>
    %417 = vector.multi_reduction <add>, %416, %cst_148 [1] : vector<8x128xf32> to vector<8xf32>
    %418 = vector.shape_cast %417 : vector<8xf32> to vector<8x1xf32>
    %c3_i32_149 = arith.constant 3 : i32
    %419 = vector.broadcast %c3_i32_149 : i32 to vector<8x8xi32>
    %420 = arith.cmpi eq, %4, %419 : vector<8x8xi32>
    %421 = vector.shape_cast %418 : vector<8x1xf32> to vector<8x1xf32>
    %422 = vector.broadcast %421 : vector<8x1xf32> to vector<8x8xf32>
    %423 = arith.select %420, %422, %411 : vector<8x8xi1>, vector<8x8xf32>
    %c4_150 = arith.constant 4 : index
    %c0_151 = arith.constant 0 : index
    %c0_152 = arith.constant 0 : index
    %424 = vector.load %arg9[%c4_150, %c0_151, %c0_152] : memref<8x8x128xf32, #tpu.memory_space<vmem>>, vector<1x8x128xf32>
    %425 = vector.shape_cast %424 : vector<1x8x128xf32> to vector<8x128xf32>
    %c4_153 = arith.constant 4 : index
    %c0_154 = arith.constant 0 : index
    %426 = vector.load %arg5[%c4_153, %c0_154] : memref<8x128xf32, #tpu.memory_space<vmem>>, vector<1x128xf32>
    %427 = vector.broadcast %426 : vector<1x128xf32> to vector<8x128xf32>
    %428 = arith.mulf %425, %427 : vector<8x128xf32>
    %cst_155 = arith.constant dense<0.000000e+00> : vector<8xf32>
    %429 = vector.multi_reduction <add>, %428, %cst_155 [1] : vector<8x128xf32> to vector<8xf32>
    %430 = vector.shape_cast %429 : vector<8xf32> to vector<8x1xf32>
    %c4_i32_156 = arith.constant 4 : i32
    %431 = vector.broadcast %c4_i32_156 : i32 to vector<8x8xi32>
    %432 = arith.cmpi eq, %4, %431 : vector<8x8xi32>
    %433 = vector.shape_cast %430 : vector<8x1xf32> to vector<8x1xf32>
    %434 = vector.broadcast %433 : vector<8x1xf32> to vector<8x8xf32>
    %435 = arith.select %432, %434, %423 : vector<8x8xi1>, vector<8x8xf32>
    %c5_157 = arith.constant 5 : index
    %c0_158 = arith.constant 0 : index
    %c0_159 = arith.constant 0 : index
    %436 = vector.load %arg9[%c5_157, %c0_158, %c0_159] : memref<8x8x128xf32, #tpu.memory_space<vmem>>, vector<1x8x128xf32>
    %437 = vector.shape_cast %436 : vector<1x8x128xf32> to vector<8x128xf32>
    %c5_160 = arith.constant 5 : index
    %c0_161 = arith.constant 0 : index
    %438 = vector.load %arg5[%c5_160, %c0_161] : memref<8x128xf32, #tpu.memory_space<vmem>>, vector<1x128xf32>
    %439 = vector.broadcast %438 : vector<1x128xf32> to vector<8x128xf32>
    %440 = arith.mulf %437, %439 : vector<8x128xf32>
    %cst_162 = arith.constant dense<0.000000e+00> : vector<8xf32>
    %441 = vector.multi_reduction <add>, %440, %cst_162 [1] : vector<8x128xf32> to vector<8xf32>
    %442 = vector.shape_cast %441 : vector<8xf32> to vector<8x1xf32>
    %c5_i32_163 = arith.constant 5 : i32
    %443 = vector.broadcast %c5_i32_163 : i32 to vector<8x8xi32>
    %444 = arith.cmpi eq, %4, %443 : vector<8x8xi32>
    %445 = vector.shape_cast %442 : vector<8x1xf32> to vector<8x1xf32>
    %446 = vector.broadcast %445 : vector<8x1xf32> to vector<8x8xf32>
    %447 = arith.select %444, %446, %435 : vector<8x8xi1>, vector<8x8xf32>
    %c6_164 = arith.constant 6 : index
    %c0_165 = arith.constant 0 : index
    %c0_166 = arith.constant 0 : index
    %448 = vector.load %arg9[%c6_164, %c0_165, %c0_166] : memref<8x8x128xf32, #tpu.memory_space<vmem>>, vector<1x8x128xf32>
    %449 = vector.shape_cast %448 : vector<1x8x128xf32> to vector<8x128xf32>
    %c6_167 = arith.constant 6 : index
    %c0_168 = arith.constant 0 : index
    %450 = vector.load %arg5[%c6_167, %c0_168] : memref<8x128xf32, #tpu.memory_space<vmem>>, vector<1x128xf32>
    %451 = vector.broadcast %450 : vector<1x128xf32> to vector<8x128xf32>
    %452 = arith.mulf %449, %451 : vector<8x128xf32>
    %cst_169 = arith.constant dense<0.000000e+00> : vector<8xf32>
    %453 = vector.multi_reduction <add>, %452, %cst_169 [1] : vector<8x128xf32> to vector<8xf32>
    %454 = vector.shape_cast %453 : vector<8xf32> to vector<8x1xf32>
    %c6_i32_170 = arith.constant 6 : i32
    %455 = vector.broadcast %c6_i32_170 : i32 to vector<8x8xi32>
    %456 = arith.cmpi eq, %4, %455 : vector<8x8xi32>
    %457 = vector.shape_cast %454 : vector<8x1xf32> to vector<8x1xf32>
    %458 = vector.broadcast %457 : vector<8x1xf32> to vector<8x8xf32>
    %459 = arith.select %456, %458, %447 : vector<8x8xi1>, vector<8x8xf32>
    %c7_171 = arith.constant 7 : index
    %c0_172 = arith.constant 0 : index
    %c0_173 = arith.constant 0 : index
    %460 = vector.load %arg9[%c7_171, %c0_172, %c0_173] : memref<8x8x128xf32, #tpu.memory_space<vmem>>, vector<1x8x128xf32>
    %461 = vector.shape_cast %460 : vector<1x8x128xf32> to vector<8x128xf32>
    %c7_174 = arith.constant 7 : index
    %c0_175 = arith.constant 0 : index
    %462 = vector.load %arg5[%c7_174, %c0_175] : memref<8x128xf32, #tpu.memory_space<vmem>>, vector<1x128xf32>
    %463 = vector.broadcast %462 : vector<1x128xf32> to vector<8x128xf32>
    %464 = arith.mulf %461, %463 : vector<8x128xf32>
    %cst_176 = arith.constant dense<0.000000e+00> : vector<8xf32>
    %465 = vector.multi_reduction <add>, %464, %cst_176 [1] : vector<8x128xf32> to vector<8xf32>
    %466 = vector.shape_cast %465 : vector<8xf32> to vector<8x1xf32>
    %c7_i32_177 = arith.constant 7 : i32
    %467 = vector.broadcast %c7_i32_177 : i32 to vector<8x8xi32>
    %468 = arith.cmpi eq, %4, %467 : vector<8x8xi32>
    %469 = vector.shape_cast %466 : vector<8x1xf32> to vector<8x1xf32>
    %470 = vector.broadcast %469 : vector<8x1xf32> to vector<8x8xf32>
    %471 = arith.select %468, %470, %459 : vector<8x8xi1>, vector<8x8xf32>
    %c0_178 = arith.constant 0 : index
    %c0_179 = arith.constant 0 : index
    %472 = vector.load %arg6[%c0_178, %c0_179] : memref<1x8xf32, #tpu.memory_space<vmem>>, vector<1x8xf32>
    %473 = vector.broadcast %472 : vector<1x8xf32> to vector<8x8xf32>
    %474 = arith.addf %471, %473 : vector<8x8xf32>
    %c0_180 = arith.constant 0 : index
    %c0_181 = arith.constant 0 : index
    %475 = vector.load %arg7[%c0_180, %c0_181] : memref<8x8xf32, #tpu.memory_space<vmem>>, vector<8x8xf32>
    tpu.vector_store %arg7[%c0_180, %c0_181], %474 {strides = array<i32>} : memref<8x8xf32, #tpu.memory_space<vmem>>, vector<8x8xf32>,
    return
  }
  func.func @transform_0(%arg0: i32) -> (i32, i32) {
    %c0_i32 = arith.constant 0 : i32
    %c0_i32_0 = arith.constant 0 : i32
    %c0_i32_1 = arith.constant 0 : i32
    return %c0_i32, %c0_i32_0 : i32, i32
  }
  func.func @transform_1(%arg0: i32) -> (i32, i32) {
    %c0_i32 = arith.constant 0 : i32
    %c0_i32_0 = arith.constant 0 : i32
    %c0_i32_1 = arith.constant 0 : i32
    return %c0_i32, %c0_i32_0 : i32, i32
  }
  func.func @transform_2(%arg0: i32) -> (i32, i32) {
    %c0_i32 = arith.constant 0 : i32
    %c0_i32_0 = arith.constant 0 : i32
    %c0_i32_1 = arith.constant 0 : i32
    return %c0_i32, %c0_i32_0 : i32, i32
  }
  func.func @transform_3(%arg0: i32) -> (i32, i32) {
    %c0_i32 = arith.constant 0 : i32
    %c0_i32_0 = arith.constant 0 : i32
    %c0_i32_1 = arith.constant 0 : i32
    return %c0_i32, %c0_i32_0 : i32, i32
  }
  func.func @transform_4(%arg0: i32) -> (i32, i32) {
    %c0_i32 = arith.constant 0 : i32
    %c0_i32_0 = arith.constant 0 : i32
    %c0_i32_1 = arith.constant 0 : i32
    return %c0_i32, %c0_i32_0 : i32, i32
  }
  func.func @transform_5(%arg0: i32) -> (i32, i32) {
    %c0_i32 = arith.constant 0 : i32
    %c0_i32_0 = arith.constant 0 : i32
    %c0_i32_1 = arith.constant 0 : i32
    return %c0_i32, %c0_i32_0 : i32, i32
  }
  func.func @transform_6(%arg0: i32) -> (i32, i32) {
    %c0_i32 = arith.constant 0 : i32
    %c0_i32_0 = arith.constant 0 : i32
    %c0_i32_1 = arith.constant 0 : i32
    return %c0_i32, %c0_i32_0 : i32, i32
  }
}

</mosaic_0001>

<llo_original>
// kernel: tpu_custom_call.1
$region0: #{tpu_custom_call.1}
  #allocation0 [shape = 'u32[]', space=smem, size = 0x4, offset = 0x4, fixed_abs, tag = 'smem constant byte address 0x4 - core index']
  #allocation1 [shape = 'u32[144,128]{1,0:T(1,128)}', space=vmem, size = 0x12000, scoped, tag = 'internal scratch']
  #allocation2 [shape = 'f32[8,8,512]{2,1,0:T(8,128)}', space=vmem, size = 0x20000, scoped, tag = 'scratch operand']
  #allocation3 [shape = 'f32[8,8,128]{2,1,0:T(8,128)}', space=vmem, size = 0x8000, scoped, tag = 'scratch operand']
  %s0 = inlined_call_operand.hbm [shape: f32[8,8], index: 0, kind: input, shape index: {}]
  %s1 = inlined_call_operand.hbm [shape: f32[1,512], index: 1, kind: input, shape index: {}]
  %s2 = inlined_call_operand.hbm [shape: f32[128,512], index: 2, kind: input, shape index: {}]
  %s3 = inlined_call_operand.vmem [shape: f32[1,512], index: 3, kind: input, shape index: {}]
  %s4 = inlined_call_operand.vmem [shape: f32[8,128], index: 4, kind: input, shape index: {}]
  %s5 = inlined_call_operand.vmem [shape: f32[1,8], index: 5, kind: input, shape index: {}]
  %s6 = inlined_call_operand.hbm [shape: f32[8,8], index: 6, kind: output, shape index: {}]
  %s7 = sld [smem:[#allocation0]]
  $region46: #{tpu_custom_call.1} parent=0
    _
  %s9 = ssub.s32 1, %s7
  %s10 = scalar_select 0, %s9, %s7
  $region1: #{tpu_custom_call.1} parent=0
    #allocation4 [shape = 'u8[4096]{0}', space=vmem, size = 0x1000, scoped, tag = 'input window, operand 0, single buffered']
    #allocation5 [shape = 's32[1]{0}', space=sflag, size = 0x4, scoped, tag = 'scoped memory for tpu_custom_call.1']
    #allocation6 [shape = 's32[1]{0}', space=sflag, size = 0x4, scoped, tag = 'scoped memory for tpu_custom_call.1']
    #allocation7 [shape = 'u8[2048]{0}', space=vmem, size = 0x800, scoped, tag = 'input window, operand 1, single buffered']
    #allocation8 [shape = 's32[1]{0}', space=sflag, size = 0x4, scoped, tag = 'scoped memory for tpu_custom_call.1']
    #allocation9 [shape = 'u8[262144]{0}', space=vmem, size = 0x40000, scoped, tag = 'input window, operand 2, single buffered']
    #allocation10 [shape = 'u8[4096]{0}', space=vmem, size = 0x1000, scoped, tag = 'output window, operand 0, single buffered']
    %11 = vsyncpa [#allocation5], 0
    %12 = vsyncpa [#allocation8], 0
    %13 = vsyncpa [#allocation6], 0
    // Predicated region
    $region2: #{tpu_custom_call.1} parent=1 // pred_check
      _
    $region3: #{tpu_custom_call.1} parent=1 // pred_check_branch
      %15 = sbr.rel (0) target = $region5
    $region4: #{tpu_custom_call.1} parent=1 // pred_region
      %s17 = ssub.s32 128, 128
      %18 = vsyncadd [#allocation5], %s17
      %s20 = sshll.u32 [#allocation4], 4
      %s21 = int_to_ptr.vmem [resolvable:$true] %s20
      %23 = dma.hbm_to_vmem [thread:$0]  %s0, 128, %s21, [#allocation5]
    $region5: #{tpu_custom_call.1} parent=1 // pred_fallthru
      _
    // Predicated region
    $region6: #{tpu_custom_call.1} parent=1 // pred_check
      _
    $region7: #{tpu_custom_call.1} parent=1 // pred_check_branch
      %25 = sbr.rel (0) target = $region9
    $region8: #{tpu_custom_call.1} parent=1 // pred_region
      %s27 = ssub.s32 64, 64
      %28 = vsyncadd [#allocation8], %s27
      %s30 = sshll.u32 [#allocation7], 4
      %s31 = int_to_ptr.vmem [resolvable:$true] %s30
      %33 = dma.hbm_to_vmem [thread:$0]  %s1, 64, %s31, [#allocation8]
    $region9: #{tpu_custom_call.1} parent=1 // pred_fallthru
      _
    // Predicated region
    $region10: #{tpu_custom_call.1} parent=1 // pred_check
      _
    $region11: #{tpu_custom_call.1} parent=1 // pred_check_branch
      %35 = sbr.rel (0) target = $region13
    $region12: #{tpu_custom_call.1} parent=1 // pred_region
      %s37 = ssub.s32 8192, 8192
      %38 = vsyncadd [#allocation8], %s37
      %s39 = sshll.u32 [#allocation9], 4
      %s40 = int_to_ptr.vmem [resolvable:$true] %s39
      %45 = dma.hbm_to_vmem [thread:$0]  %s2, 8192, %s40, [#allocation8], 512, 512, 32
    $region13: #{tpu_custom_call.1} parent=1 // pred_fallthru
      _
    // Predicated region
    $region14: #{tpu_custom_call.1} parent=1 // pred_check
      _
    $region15: #{tpu_custom_call.1} parent=1 // pred_check_branch
      %47 = sbr.rel (0) target = $region17
    $region16: #{tpu_custom_call.1} parent=1 // pred_region
      _
    $region17: #{tpu_custom_call.1} parent=1 // pred_fallthru
      _
    // Predicated region
    $region18: #{tpu_custom_call.1} parent=1 // pred_check
      _
    $region19: #{tpu_custom_call.1} parent=1 // pred_check_branch
      %49 = sbr.rel (0) target = $region21
    $region20: #{tpu_custom_call.1} parent=1 // pred_region
      _
    $region21: #{tpu_custom_call.1} parent=1 // pred_fallthru
      _
    // Predicated region
    $region22: #{tpu_custom_call.1} parent=1 // pred_check
      _
    $region23: #{tpu_custom_call.1} parent=1 // pred_check_branch
      %51 = sbr.rel (0) target = $region25
    $region24: #{tpu_custom_call.1} parent=1 // pred_region
      _
    $region25: #{tpu_custom_call.1} parent=1 // pred_fallthru
      _
    // Predicated region
    $region26: #{tpu_custom_call.1} parent=1 // pred_check
      _
    $region27: #{tpu_custom_call.1} parent=1 // pred_check_branch
      %53 = sbr.rel (0) target = $region29
    $region28: #{tpu_custom_call.1} parent=1 // pred_region
      %54 = dma.done [#allocation5], 128
    $region29: #{tpu_custom_call.1} parent=1 // pred_fallthru
      _
    // Predicated region
    $region30: #{tpu_custom_call.1} parent=1 // pred_check
      _
    $region31: #{tpu_custom_call.1} parent=1 // pred_check_branch
      %56 = sbr.rel (0) target = $region33
    $region32: #{tpu_custom_call.1} parent=1 // pred_region
      %57 = dma.done [#allocation8], 64
    $region33: #{tpu_custom_call.1} parent=1 // pred_fallthru
      _
    // Predicated region
    $region34: #{tpu_custom_call.1} parent=1 // pred_check
      _
    $region35: #{tpu_custom_call.1} parent=1 // pred_check_branch
      %59 = sbr.rel (0) target = $region37
    $region36: #{tpu_custom_call.1} parent=1 // pred_region
      %60 = dma.done [#allocation8], 8192
    $region37: #{tpu_custom_call.1} parent=1 // pred_fallthru
      _
    %v61 = vld [vmem:[#allocation7] sm:$0xf]
    %v62 = vld [vmem:[%s3] sm:$0xf]
    %v63 = vld [vmem:[#allocation9] sm:$0xff]
    %v64 = vld [vmem:[#allocation9 + $0x8] sm:$0xff]
    %v65 = vld [vmem:[#allocation9 + $0x10] sm:$0xff]
    %v66 = vld [vmem:[#allocation9 + $0x18] sm:$0xff]
    %v67 = vld [vmem:[#allocation9 + $0x20] sm:$0xff]
    %v68 = vld [vmem:[#allocation9 + $0x28] sm:$0xff]
    %v69 = vld [vmem:[#allocation9 + $0x30] sm:$0xff]
    %v70 = vld [vmem:[#allocation9 + $0x38] sm:$0xff]
    %v71 = vld [vmem:[#allocation9 + $0x40] sm:$0xff]
    %v72 = vld [vmem:[#allocation9 + $0x48] sm:$0xff]
    %v73 = vld [vmem:[#allocation9 + $0x50] sm:$0xff]
    %v74 = vld [vmem:[#allocation9 + $0x58] sm:$0xff]
    %v75 = vld [vmem:[#allocation9 + $0x60] sm:$0xff]
    %v76 = vld [vmem:[#allocation9 + $0x68] sm:$0xff]
    %v77 = vld [vmem:[#allocation9 + $0x70] sm:$0xff]
    %v78 = vld [vmem:[#allocation9 + $0x78] sm:$0xff]
    %v79 = vld [vmem:[#allocation9 + $0x80] sm:$0xff]
    %v80 = vld [vmem:[#allocation9 + $0x88] sm:$0xff]
    %v81 = vld [vmem:[#allocation9 + $0x90] sm:$0xff]
    %v82 = vld [vmem:[#allocation9 + $0x98] sm:$0xff]
    %v83 = vld [vmem:[#allocation9 + $0xa0] sm:$0xff]
    %v84 = vld [vmem:[#allocation9 + $0xa8] sm:$0xff]
    %v85 = vld [vmem:[#allocation9 + $0xb0] sm:$0xff]
    %v86 = vld [vmem:[#allocation9 + $0xb8] sm:$0xff]
    %v87 = vld [vmem:[#allocation9 + $0xc0] sm:$0xff]
    %v88 = vld [vmem:[#allocation9 + $0xc8] sm:$0xff]
    %v89 = vld [vmem:[#allocation9 + $0xd0] sm:$0xff]
    %v90 = vld [vmem:[#allocation9 + $0xd8] sm:$0xff]
    %v91 = vld [vmem:[#allocation9 + $0xe0] sm:$0xff]
    %v92 = vld [vmem:[#allocation9 + $0xe8] sm:$0xff]
    %v93 = vld [vmem:[#allocation9 + $0xf0] sm:$0xff]
    %v94 = vld [vmem:[#allocation9 + $0xf8] sm:$0xff]
    %v95 = vld [vmem:[#allocation9 + $0x100] sm:$0xff]
    %v96 = vld [vmem:[#allocation9 + $0x108] sm:$0xff]
    %v97 = vld [vmem:[#allocation9 + $0x110] sm:$0xff]
    %v98 = vld [vmem:[#allocation9 + $0x118] sm:$0xff]
    %v99 = vld [vmem:[#allocation9 + $0x120] sm:$0xff]
    %v100 = vld [vmem:[#allocation9 + $0x128] sm:$0xff]
    %v101 = vld [vmem:[#allocation9 + $0x130] sm:$0xff]
    %v102 = vld [vmem:[#allocation9 + $0x138] sm:$0xff]
    %v103 = vld [vmem:[#allocation9 + $0x140] sm:$0xff]
    %v104 = vld [vmem:[#allocation9 + $0x148] sm:$0xff]
    %v105 = vld [vmem:[#allocation9 + $0x150] sm:$0xff]
    %v106 = vld [vmem:[#allocation9 + $0x158] sm:$0xff]
    %v107 = vld [vmem:[#allocation9 + $0x160] sm:$0xff]
    %v108 = vld [vmem:[#allocation9 + $0x168] sm:$0xff]
    %v109 = vld [vmem:[#allocation9 + $0x170] sm:$0xff]
    %v110 = vld [vmem:[#allocation9 + $0x178] sm:$0xff]
    %v111 = vld [vmem:[#allocation9 + $0x180] sm:$0xff]
    %v112 = vld [vmem:[#allocation9 + $0x188] sm:$0xff]
    %v113 = vld [vmem:[#allocation9 + $0x190] sm:$0xff]
    %v114 = vld [vmem:[#allocation9 + $0x198] sm:$0xff]
    %v115 = vld [vmem:[#allocation9 + $0x1a0] sm:$0xff]
    %v116 = vld [vmem:[#allocation9 + $0x1a8] sm:$0xff]
    %v117 = vld [vmem:[#allocation9 + $0x1b0] sm:$0xff]
    %v118 = vld [vmem:[#allocation9 + $0x1b8] sm:$0xff]
    %v119 = vld [vmem:[#allocation9 + $0x1c0] sm:$0xff]
    %v120 = vld [vmem:[#allocation9 + $0x1c8] sm:$0xff]
    %v121 = vld [vmem:[#allocation9 + $0x1d0] sm:$0xff]
    %v122 = vld [vmem:[#allocation9 + $0x1d8] sm:$0xff]
    %v123 = vld [vmem:[#allocation9 + $0x1e0] sm:$0xff]
    %v124 = vld [vmem:[#allocation9 + $0x1e8] sm:$0xff]
    %v125 = vld [vmem:[#allocation9 + $0x1f0] sm:$0xff]
    %v126 = vld [vmem:[#allocation9 + $0x1f8] sm:$0xff]
    %v127 = vld [vmem:[#allocation4] sm:$0xff]
    %v128 = vlaneseq
    %v129 = vand.u32 %v128, 127
    %vm130 = vcmp.eq.s32.totalorder %v129, 0
    %v131 = vsel %vm130, %v127, 0.0
    %vm132 = vcmask 64512
    %v133 = vsel %vm132, %v131, 0.0
    %134 = vadd.xlane.f32.xlu0 %v133
    %v135 = vpop.xlane.xlu0 %134
    %v137 = vlaneseq
    %v138 = vshrl.u32 %v137, 7
    %v139 = vsub.s32 0, %v138
    %v140 = vrot.slane %v61, %v139
    %v141 = vlaneseq
    %v142 = vshrl.u32 %v141, 7
    %v143 = vsub.s32 1, %v142
    %v144 = vrot.slane %v61, %v143
    %v145 = vlaneseq
    %v146 = vshrl.u32 %v145, 7
    %v147 = vsub.s32 2, %v146
    %v148 = vrot.slane %v61, %v147
    %v149 = vlaneseq
    %v150 = vshrl.u32 %v149, 7
    %v151 = vsub.s32 3, %v150
    %v152 = vrot.slane %v61, %v151
    %v157 = vmul.f32 %v135, %v140
    %v158 = vmul.f32 %v135, %v144
    %v159 = vmul.f32 %v135, %v148
    %v160 = vmul.f32 %v135, %v152
    %v162 = vlaneseq
    %v163 = vshrl.u32 %v162, 7
    %v164 = vsub.s32 0, %v163
    %v165 = vrot.slane %v62, %v164
    %v166 = vlaneseq
    %v167 = vshrl.u32 %v166, 7
    %v168 = vsub.s32 1, %v167
    %v169 = vrot.slane %v62, %v168
    %v170 = vlaneseq
    %v171 = vshrl.u32 %v170, 7
    %v172 = vsub.s32 2, %v171
    %v173 = vrot.slane %v62, %v172
    %v174 = vlaneseq
    %v175 = vshrl.u32 %v174, 7
    %v176 = vsub.s32 3, %v175
    %v177 = vrot.slane %v62, %v176
    %v182 = vadd.f32 %v157, %v165
    %v183 = vadd.f32 %v158, %v169
    %v184 = vadd.f32 %v159, %v173
    %v185 = vadd.f32 %v160, %v177
    %186 = vst [vmem:[#allocation2] sm:$0xff] %v182
    %187 = vst [vmem:[#allocation2 + $0x8] sm:$0xff] %v183
    %188 = vst [vmem:[#allocation2 + $0x10] sm:$0xff] %v184
    %189 = vst [vmem:[#allocation2 + $0x18] sm:$0xff] %v185
    %vm190 = vcmp.eq.s32.totalorder %v129, 1
    %v191 = vsel %vm190, %v127, 0.0
    %v192 = vsel %vm132, %v191, 0.0
    %193 = vadd.xlane.f32.xlu0 %v192
    %v194 = vpop.xlane.xlu0 %193
    %v195 = vmul.f32 %v194, %v140
    %v196 = vmul.f32 %v194, %v144
    %v197 = vmul.f32 %v194, %v148
    %v198 = vmul.f32 %v194, %v152
    %v199 = vadd.f32 %v195, %v165
    %v200 = vadd.f32 %v196, %v169
    %v201 = vadd.f32 %v197, %v173
    %v202 = vadd.f32 %v198, %v177
    %s203 = scalar_lea.vmem [#allocation2], 32
    %204 = vst [vmem:[%s203] sm:$0xff] %v199
    %205 = vst [vmem:[%s203 + $0x8] sm:$0xff] %v200
    %206 = vst [vmem:[%s203 + $0x10] sm:$0xff] %v201
    %207 = vst [vmem:[%s203 + $0x18] sm:$0xff] %v202
    %vm208 = vcmp.eq.s32.totalorder %v129, 2
    %v209 = vsel %vm208, %v127, 0.0
    %v210 = vsel %vm132, %v209, 0.0
    %211 = vadd.xlane.f32.xlu0 %v210
    %v212 = vpop.xlane.xlu0 %211
    %v213 = vmul.f32 %v212, %v140
    %v214 = vmul.f32 %v212, %v144
    %v215 = vmul.f32 %v212, %v148
    %v216 = vmul.f32 %v212, %v152
    %v217 = vadd.f32 %v213, %v165
    %v218 = vadd.f32 %v214, %v169
    %v219 = vadd.f32 %v215, %v173
    %v220 = vadd.f32 %v216, %v177
    %s221 = scalar_lea.vmem [#allocation2], 64
    %222 = vst [vmem:[%s221] sm:$0xff] %v217
    %223 = vst [vmem:[%s221 + $0x8] sm:$0xff] %v218
    %224 = vst [vmem:[%s221 + $0x10] sm:$0xff] %v219
    %225 = vst [vmem:[%s221 + $0x18] sm:$0xff] %v220
    %vm226 = vcmp.eq.s32.totalorder %v129, 3
    %v227 = vsel %vm226, %v127, 0.0
    %v228 = vsel %vm132, %v227, 0.0
    %229 = vadd.xlane.f32.xlu0 %v228
    %v230 = vpop.xlane.xlu0 %229
    %v231 = vmul.f32 %v230, %v140
    %v232 = vmul.f32 %v230, %v144
    %v233 = vmul.f32 %v230, %v148
    %v234 = vmul.f32 %v230, %v152
    %v235 = vadd.f32 %v231, %v165
    %v236 = vadd.f32 %v232, %v169
    %v237 = vadd.f32 %v233, %v173
    %v238 = vadd.f32 %v234, %v177
    %s239 = scalar_lea.vmem [#allocation2], 96
    %240 = vst [vmem:[%s239] sm:$0xff] %v235
    %241 = vst [vmem:[%s239 + $0x8] sm:$0xff] %v236
    %242 = vst [vmem:[%s239 + $0x10] sm:$0xff] %v237
    %243 = vst [vmem:[%s239 + $0x18] sm:$0xff] %v238
    %vm244 = vcmp.eq.s32.totalorder %v129, 4
    %v245 = vsel %vm244, %v127, 0.0
    %v246 = vsel %vm132, %v245, 0.0
    %247 = vadd.xlane.f32.xlu0 %v246
    %v248 = vpop.xlane.xlu0 %247
    %v249 = vmul.f32 %v248, %v140
    %v250 = vmul.f32 %v248, %v144
    %v251 = vmul.f32 %v248, %v148
    %v252 = vmul.f32 %v248, %v152
    %v253 = vadd.f32 %v249, %v165
    %v254 = vadd.f32 %v250, %v169
    %v255 = vadd.f32 %v251, %v173
    %v256 = vadd.f32 %v252, %v177
    %s257 = scalar_lea.vmem [#allocation2], 128
    %258 = vst [vmem:[%s257] sm:$0xff] %v253
    %259 = vst [vmem:[%s257 + $0x8] sm:$0xff] %v254
    %260 = vst [vmem:[%s257 + $0x10] sm:$0xff] %v255
    %261 = vst [vmem:[%s257 + $0x18] sm:$0xff] %v256
    %vm262 = vcmp.eq.s32.totalorder %v129, 5
    %v263 = vsel %vm262, %v127, 0.0
    %v264 = vsel %vm132, %v263, 0.0
    %265 = vadd.xlane.f32.xlu0 %v264
    %v266 = vpop.xlane.xlu0 %265
    %v267 = vmul.f32 %v266, %v140
    %v268 = vmul.f32 %v266, %v144
    %v269 = vmul.f32 %v266, %v148
    %v270 = vmul.f32 %v266, %v152
    %v271 = vadd.f32 %v267, %v165
    %v272 = vadd.f32 %v268, %v169
    %v273 = vadd.f32 %v269, %v173
    %v274 = vadd.f32 %v270, %v177
    %s275 = scalar_lea.vmem [#allocation2], 160
    %276 = vst [vmem:[%s275] sm:$0xff] %v271
    %277 = vst [vmem:[%s275 + $0x8] sm:$0xff] %v272
    %278 = vst [vmem:[%s275 + $0x10] sm:$0xff] %v273
    %279 = vst [vmem:[%s275 + $0x18] sm:$0xff] %v274
    %vm280 = vcmp.eq.s32.totalorder %v129, 6
    %v281 = vsel %vm280, %v127, 0.0
    %v282 = vsel %vm132, %v281, 0.0
    %283 = vadd.xlane.f32.xlu0 %v282
    %v284 = vpop.xlane.xlu0 %283
    %v285 = vmul.f32 %v284, %v140
    %v286 = vmul.f32 %v284, %v144
    %v287 = vmul.f32 %v284, %v148
    %v288 = vmul.f32 %v284, %v152
    %v289 = vadd.f32 %v285, %v165
    %v290 = vadd.f32 %v286, %v169
    %v291 = vadd.f32 %v287, %v173
    %v292 = vadd.f32 %v288, %v177
    %s293 = scalar_lea.vmem [#allocation2], 192
    %294 = vst [vmem:[%s293] sm:$0xff] %v289
    %295 = vst [vmem:[%s293 + $0x8] sm:$0xff] %v290
    %296 = vst [vmem:[%s293 + $0x10] sm:$0xff] %v291
    %297 = vst [vmem:[%s293 + $0x18] sm:$0xff] %v292
    %vm298 = vcmp.eq.s32.totalorder %v129, 7
    %v299 = vsel %vm298, %v127, 0.0
    %v300 = vsel %vm132, %v299, 0.0
    %301 = vadd.xlane.f32.xlu0 %v300
    %v302 = vpop.xlane.xlu0 %301
    %v303 = vmul.f32 %v302, %v140
    %v304 = vmul.f32 %v302, %v144
    %v305 = vmul.f32 %v302, %v148
    %v306 = vmul.f32 %v302, %v152
    %v307 = vadd.f32 %v303, %v165
    %v308 = vadd.f32 %v304, %v169
    %v309 = vadd.f32 %v305, %v173
    %v310 = vadd.f32 %v306, %v177
    %s311 = scalar_lea.vmem [#allocation2], 224
    %312 = vst [vmem:[%s311] sm:$0xff] %v307
    %313 = vst [vmem:[%s311 + $0x8] sm:$0xff] %v308
    %314 = vst [vmem:[%s311 + $0x10] sm:$0xff] %v309
    %315 = vst [vmem:[%s311 + $0x18] sm:$0xff] %v310
    %v316 = vld [vmem:[#allocation2] sm:$0xff]
    %v317 = vld [vmem:[#allocation2 + $0x8] sm:$0xff]
    %v318 = vld [vmem:[#allocation2 + $0x10] sm:$0xff]
    %v319 = vld [vmem:[#allocation2 + $0x18] sm:$0xff]
    %320 = vmatprep.subr.mxu0 %v64
    %321 = vmatpush1.msra.mxu0 %v63
    %322 = vmatprep.subr.mxu0 %v68
    %323 = vmatpush1.msra.mxu0 %v67
    %324 = vmatprep.subr.mxu0 %v72
    %325 = vmatpush1.msra.mxu0 %v71
    %326 = vmatprep.subr.mxu0 %v76
    %327 = vmatpush1.msra.mxu0 %v75
    %328 = vmatprep.subr.mxu0 %v80
    %329 = vmatpush1.msra.mxu0 %v79
    %330 = vmatprep.subr.mxu0 %v84
    %331 = vmatpush1.msra.mxu0 %v83
    %332 = vmatprep.subr.mxu0 %v88
    %333 = vmatpush1.msra.mxu0 %v87
    %334 = vmatprep.subr.mxu0 %v92
    %335 = vmatpush1.msra.mxu0 %v91
    %336 = vmatprep.subr.mxu0 %v96
    %337 = vmatpush1.msra.mxu0 %v95
    %338 = vmatprep.subr.mxu0 %v100
    %339 = vmatpush1.msra.mxu0 %v99
    %340 = vmatprep.subr.mxu0 %v104
    %341 = vmatpush1.msra.mxu0 %v103
    %342 = vmatprep.subr.mxu0 %v108
    %343 = vmatpush1.msra.mxu0 %v107
    %344 = vmatprep.subr.mxu0 %v112
    %345 = vmatpush1.msra.mxu0 %v111
    %346 = vmatprep.subr.mxu0 %v116
    %347 = vmatpush1.msra.mxu0 %v115
    %348 = vmatprep.subr.mxu0 %v120
    %349 = vmatpush1.msra.mxu0 %v119
    %350 = vmatprep.subr.mxu0 %v124
    %351 = vmatpush1.msra.mxu0 %v123
    %352 = vmatprep.subr.mxu0 0.0
    %353 = vmatpush1.msra.mxu0 0.0
    %354 = vmatprep.subr.mxu0 0.0
    %355 = vmatpush1.msra.mxu0 0.0
    %356 = vmatprep.subr.mxu0 0.0
    %357 = vmatpush1.msra.mxu0 0.0
    %358 = vmatprep.subr.mxu0 0.0
    %359 = vmatpush1.msra.mxu0 0.0
    %360 = vmatprep.subr.mxu0 0.0
    %361 = vmatpush1.msra.mxu0 0.0
    %362 = vmatprep.subr.mxu0 0.0
    %363 = vmatpush1.msra.mxu0 0.0
    %364 = vmatprep.subr.mxu0 0.0
    %365 = vmatpush1.msra.mxu0 0.0
    %366 = vmatprep.subr.mxu0 0.0
    %367 = vmatpush1.msra.mxu0 0.0
    %368 = vmatprep.subr.mxu0 0.0
    %369 = vmatpush1.msra.mxu0 0.0
    %370 = vmatprep.subr.mxu0 0.0
    %371 = vmatpush1.msra.mxu0 0.0
    %372 = vmatprep.subr.mxu0 0.0
    %373 = vmatpush1.msra.mxu0 0.0
    %374 = vmatprep.subr.mxu0 0.0
    %375 = vmatpush1.msra.mxu0 0.0
    %376 = vmatprep.subr.mxu0 0.0
    %377 = vmatpush1.msra.mxu0 0.0
    %378 = vmatprep.subr.mxu0 0.0
    %379 = vmatpush1.msra.mxu0 0.0
    %380 = vmatprep.subr.mxu0 0.0
    %381 = vmatpush1.msra.mxu0 0.0
    %382 = vmatprep.subr.mxu0 0.0
    %383 = vmatpush1.msra.mxu0 0.0
    %384 = vmatprep.mubr.f32.mxu0 0.0
    %385 = vmatmul.mubr.f32.gmra.mrb[0].mxu0 0.0
    %v386 = vpop.f32.mrb[0].mxu0
    %v387 = vadd.f32 0.0, %v386
    %v388 = vpop.f32.mrb[0].mxu0
    %v389 = vadd.f32 0.0, %v388
    %390 = vdwg.mxu0
    %391 = vmatprep.subr.mxu0 %v66
    %392 = vmatpush1.msra.mxu0 %v65
    %393 = vmatprep.subr.mxu0 %v70
    %394 = vmatpush1.msra.mxu0 %v69
    %395 = vmatprep.subr.mxu0 %v74
    %396 = vmatpush1.msra.mxu0 %v73
    %397 = vmatprep.subr.mxu0 %v78
    %398 = vmatpush1.msra.mxu0 %v77
    %399 = vmatprep.subr.mxu0 %v82
    %400 = vmatpush1.msra.mxu0 %v81
    %401 = vmatprep.subr.mxu0 %v86
    %402 = vmatpush1.msra.mxu0 %v85
    %403 = vmatprep.subr.mxu0 %v90
    %404 = vmatpush1.msra.mxu0 %v89
    %405 = vmatprep.subr.mxu0 %v94
    %406 = vmatpush1.msra.mxu0 %v93
    %407 = vmatprep.subr.mxu0 %v98
    %408 = vmatpush1.msra.mxu0 %v97
    %409 = vmatprep.subr.mxu0 %v102
    %410 = vmatpush1.msra.mxu0 %v101
    %411 = vmatprep.subr.mxu0 %v106
    %412 = vmatpush1.msra.mxu0 %v105
    %413 = vmatprep.subr.mxu0 %v110
    %414 = vmatpush1.msra.mxu0 %v109
    %415 = vmatprep.subr.mxu0 %v114
    %416 = vmatpush1.msra.mxu0 %v113
    %417 = vmatprep.subr.mxu0 %v118
    %418 = vmatpush1.msra.mxu0 %v117
    %419 = vmatprep.subr.mxu0 %v122
    %420 = vmatpush1.msra.mxu0 %v121
    %421 = vmatprep.subr.mxu0 %v126
    %422 = vmatpush1.msra.mxu0 %v125
    %423 = vmatprep.subr.mxu0 0.0
    %424 = vmatpush1.msra.mxu0 0.0
    %425 = vmatprep.subr.mxu0 0.0
    %426 = vmatpush1.msra.mxu0 0.0
    %427 = vmatprep.subr.mxu0 0.0
    %428 = vmatpush1.msra.mxu0 0.0
    %429 = vmatprep.subr.mxu0 0.0
    %430 = vmatpush1.msra.mxu0 0.0
    %431 = vmatprep.subr.mxu0 0.0
    %432 = vmatpush1.msra.mxu0 0.0
    %433 = vmatprep.subr.mxu0 0.0
    %434 = vmatpush1.msra.mxu0 0.0
    %435 = vmatprep.subr.mxu0 0.0
    %436 = vmatpush1.msra.mxu0 0.0
    %437 = vmatprep.subr.mxu0 0.0
    %438 = vmatpush1.msra.mxu0 0.0
    %439 = vmatprep.subr.mxu0 0.0
    %440 = vmatpush1.msra.mxu0 0.0
    %441 = vmatprep.subr.mxu0 0.0
    %442 = vmatpush1.msra.mxu0 0.0
    %443 = vmatprep.subr.mxu0 0.0
    %444 = vmatpush1.msra.mxu0 0.0
    %445 = vmatprep.subr.mxu0 0.0
    %446 = vmatpush1.msra.mxu0 0.0
    %447 = vmatprep.subr.mxu0 0.0
    %448 = vmatpush1.msra.mxu0 0.0
    %449 = vmatprep.subr.mxu0 0.0
    %450 = vmatpush1.msra.mxu0 0.0
    %451 = vmatprep.subr.mxu0 0.0
    %452 = vmatpush1.msra.mxu0 0.0
    %453 = vmatprep.subr.mxu0 0.0
    %454 = vmatpush1.msra.mxu0 0.0
    %455 = vmatprep.mubr.f32.mxu0 0.0
    %456 = vmatmul.mubr.f32.gmra.mrb[0].mxu0 0.0
    %v457 = vpop.f32.mrb[0].mxu0
    %v458 = vadd.f32 0.0, %v457
    %v459 = vpop.f32.mrb[0].mxu0
    %v460 = vadd.f32 0.0, %v459
    %461 = vdwg.mxu0
    %v462 = vadd.f32 %v316, %v387
    %v463 = vadd.f32 %v317, %v389
    %v464 = vadd.f32 %v318, %v458
    %v465 = vadd.f32 %v319, %v460
    %v466 = vxor.u32 %v462, 2147483648
    %v467 = vmul.f32 %v466, 1.442695
    %v468 = vpow.pop %v467
    %v469 = vadd.f32 %v468, 1.0
    %v470 = vrcp.pop %v469
    %v471 = vmul.f32 1.0, %v470
    %v472 = vxor.u32 %v463, 2147483648
    %v473 = vmul.f32 %v472, 1.442695
    %v474 = vpow.pop %v473
    %v475 = vadd.f32 %v474, 1.0
    %v476 = vrcp.pop %v475
    %v477 = vmul.f32 1.0, %v476
    %v478 = vtanh.pop %v464
    %v479 = vxor.u32 %v465, 2147483648
    %v480 = vmul.f32 %v479, 1.442695
    %v481 = vpow.pop %v480
    %v482 = vadd.f32 %v481, 1.0
    %v483 = vrcp.pop %v482
    %v484 = vmul.f32 1.0, %v483
    %v485 = vmul.f32 %v477, 0.0
    %v486 = vmul.f32 %v471, %v478
    %v487 = vadd.f32 %v485, %v486
    %v488 = vtanh.pop %v487
    %v489 = vmul.f32 %v484, %v488
    %490 = vst [vmem:[#allocation3] sm:$0xff] %v489
    %v491 = vld [vmem:[%s203] sm:$0xff]
    %v492 = vld [vmem:[%s203 + $0x8] sm:$0xff]
    %v493 = vld [vmem:[%s203 + $0x10] sm:$0xff]
    %v494 = vld [vmem:[%s203 + $0x18] sm:$0xff]
    %495 = vmatprep.subr.mxu0 %v64
    %496 = vmatpush1.msra.mxu0 %v63
    %497 = vmatprep.subr.mxu0 %v68
    %498 = vmatpush1.msra.mxu0 %v67
    %499 = vmatprep.subr.mxu0 %v72
    %500 = vmatpush1.msra.mxu0 %v71
    %501 = vmatprep.subr.mxu0 %v76
    %502 = vmatpush1.msra.mxu0 %v75
    %503 = vmatprep.subr.mxu0 %v80
    %504 = vmatpush1.msra.mxu0 %v79
    %505 = vmatprep.subr.mxu0 %v84
    %506 = vmatpush1.msra.mxu0 %v83
    %507 = vmatprep.subr.mxu0 %v88
    %508 = vmatpush1.msra.mxu0 %v87
    %509 = vmatprep.subr.mxu0 %v92
    %510 = vmatpush1.msra.mxu0 %v91
    %511 = vmatprep.subr.mxu0 %v96
    %512 = vmatpush1.msra.mxu0 %v95
    %513 = vmatprep.subr.mxu0 %v100
    %514 = vmatpush1.msra.mxu0 %v99
    %515 = vmatprep.subr.mxu0 %v104
    %516 = vmatpush1.msra.mxu0 %v103
    %517 = vmatprep.subr.mxu0 %v108
    %518 = vmatpush1.msra.mxu0 %v107
    %519 = vmatprep.subr.mxu0 %v112
    %520 = vmatpush1.msra.mxu0 %v111
    %521 = vmatprep.subr.mxu0 %v116
    %522 = vmatpush1.msra.mxu0 %v115
    %523 = vmatprep.subr.mxu0 %v120
    %524 = vmatpush1.msra.mxu0 %v119
    %525 = vmatprep.subr.mxu0 %v124
    %526 = vmatpush1.msra.mxu0 %v123
    %527 = vmatprep.subr.mxu0 0.0
    %528 = vmatpush1.msra.mxu0 0.0
    %529 = vmatprep.subr.mxu0 0.0
    %530 = vmatpush1.msra.mxu0 0.0
    %531 = vmatprep.subr.mxu0 0.0
    %532 = vmatpush1.msra.mxu0 0.0
    %533 = vmatprep.subr.mxu0 0.0
    %534 = vmatpush1.msra.mxu0 0.0
    %535 = vmatprep.subr.mxu0 0.0
    %536 = vmatpush1.msra.mxu0 0.0
    %537 = vmatprep.subr.mxu0 0.0
    %538 = vmatpush1.msra.mxu0 0.0
    %539 = vmatprep.subr.mxu0 0.0
    %540 = vmatpush1.msra.mxu0 0.0
    %541 = vmatprep.subr.mxu0 0.0
    %542 = vmatpush1.msra.mxu0 0.0
    %543 = vmatprep.subr.mxu0 0.0
    %544 = vmatpush1.msra.mxu0 0.0
    %545 = vmatprep.subr.mxu0 0.0
    %546 = vmatpush1.msra.mxu0 0.0
    %547 = vmatprep.subr.mxu0 0.0
    %548 = vmatpush1.msra.mxu0 0.0
    %549 = vmatprep.subr.mxu0 0.0
    %550 = vmatpush1.msra.mxu0 0.0
    %551 = vmatprep.subr.mxu0 0.0
    %552 = vmatpush1.msra.mxu0 0.0
    %553 = vmatprep.subr.mxu0 0.0
    %554 = vmatpush1.msra.mxu0 0.0
    %555 = vmatprep.subr.mxu0 0.0
    %556 = vmatpush1.msra.mxu0 0.0
    %557 = vmatprep.subr.mxu0 0.0
    %558 = vmatpush1.msra.mxu0 0.0
    %559 = vmatprep.mubr.f32.mxu0 0.0
    %560 = vmatmul.mubr.f32.gmra.mrb[0].mxu0 %v489
    %v561 = vpop.f32.mrb[0].mxu0
    %v562 = vadd.f32 0.0, %v561
    %v563 = vpop.f32.mrb[0].mxu0
    %v564 = vadd.f32 0.0, %v563
    %565 = vdwg.mxu0
    %566 = vmatprep.subr.mxu0 %v66
    %567 = vmatpush1.msra.mxu0 %v65
    %568 = vmatprep.subr.mxu0 %v70
    %569 = vmatpush1.msra.mxu0 %v69
    %570 = vmatprep.subr.mxu0 %v74
    %571 = vmatpush1.msra.mxu0 %v73
    %572 = vmatprep.subr.mxu0 %v78
    %573 = vmatpush1.msra.mxu0 %v77
    %574 = vmatprep.subr.mxu0 %v82
    %575 = vmatpush1.msra.mxu0 %v81
    %576 = vmatprep.subr.mxu0 %v86
    %577 = vmatpush1.msra.mxu0 %v85
    %578 = vmatprep.subr.mxu0 %v90
    %579 = vmatpush1.msra.mxu0 %v89
    %580 = vmatprep.subr.mxu0 %v94
    %581 = vmatpush1.msra.mxu0 %v93
    %582 = vmatprep.subr.mxu0 %v98
    %583 = vmatpush1.msra.mxu0 %v97
    %584 = vmatprep.subr.mxu0 %v102
    %585 = vmatpush1.msra.mxu0 %v101
    %586 = vmatprep.subr.mxu0 %v106
    %587 = vmatpush1.msra.mxu0 %v105
    %588 = vmatprep.subr.mxu0 %v110
    %589 = vmatpush1.msra.mxu0 %v109
    %590 = vmatprep.subr.mxu0 %v114
    %591 = vmatpush1.msra.mxu0 %v113
    %592 = vmatprep.subr.mxu0 %v118
    %593 = vmatpush1.msra.mxu0 %v117
    %594 = vmatprep.subr.mxu0 %v122
    %595 = vmatpush1.msra.mxu0 %v121
    %596 = vmatprep.subr.mxu0 %v126
    %597 = vmatpush1.msra.mxu0 %v125
    %598 = vmatprep.subr.mxu0 0.0
    %599 = vmatpush1.msra.mxu0 0.0
    %600 = vmatprep.subr.mxu0 0.0
    %601 = vmatpush1.msra.mxu0 0.0
    %602 = vmatprep.subr.mxu0 0.0
    %603 = vmatpush1.msra.mxu0 0.0
    %604 = vmatprep.subr.mxu0 0.0
    %605 = vmatpush1.msra.mxu0 0.0
    %606 = vmatprep.subr.mxu0 0.0
    %607 = vmatpush1.msra.mxu0 0.0
    %608 = vmatprep.subr.mxu0 0.0
    %609 = vmatpush1.msra.mxu0 0.0
    %610 = vmatprep.subr.mxu0 0.0
    %611 = vmatpush1.msra.mxu0 0.0
    %612 = vmatprep.subr.mxu0 0.0
    %613 = vmatpush1.msra.mxu0 0.0
    %614 = vmatprep.subr.mxu0 0.0
    %615 = vmatpush1.msra.mxu0 0.0
    %616 = vmatprep.subr.mxu0 0.0
    %617 = vmatpush1.msra.mxu0 0.0
    %618 = vmatprep.subr.mxu0 0.0
    %619 = vmatpush1.msra.mxu0 0.0
    %620 = vmatprep.subr.mxu0 0.0
    %621 = vmatpush1.msra.mxu0 0.0
    %622 = vmatprep.subr.mxu0 0.0
    %623 = vmatpush1.msra.mxu0 0.0
    %624 = vmatprep.subr.mxu0 0.0
    %625 = vmatpush1.msra.mxu0 0.0
    %626 = vmatprep.subr.mxu0 0.0
    %627 = vmatpush1.msra.mxu0 0.0
    %628 = vmatprep.subr.mxu0 0.0
    %629 = vmatpush1.msra.mxu0 0.0
    %630 = vmatprep.mubr.f32.mxu0 0.0
    %631 = vmatmul.mubr.f32.gmra.mrb[0].mxu0 %v489
    %v632 = vpop.f32.mrb[0].mxu0
    %v633 = vadd.f32 0.0, %v632
    %v634 = vpop.f32.mrb[0].mxu0
    %v635 = vadd.f32 0.0, %v634
    %636 = vdwg.mxu0
    %v637 = vadd.f32 %v491, %v562
    %v638 = vadd.f32 %v492, %v564
    %v639 = vadd.f32 %v493, %v633
    %v640 = vadd.f32 %v494, %v635
    %v641 = vxor.u32 %v637, 2147483648
    %v642 = vmul.f32 %v641, 1.442695
    %v643 = vpow.pop %v642
    %v644 = vadd.f32 %v643, 1.0
    %v645 = vrcp.pop %v644
    %v646 = vmul.f32 1.0, %v645
    %v647 = vxor.u32 %v638, 2147483648
    %v648 = vmul.f32 %v647, 1.442695
    %v649 = vpow.pop %v648
    %v650 = vadd.f32 %v649, 1.0
    %v651 = vrcp.pop %v650
    %v652 = vmul.f32 1.0, %v651
    %v653 = vtanh.pop %v639
    %v654 = vxor.u32 %v640, 2147483648
    %v655 = vmul.f32 %v654, 1.442695
    %v656 = vpow.pop %v655
    %v657 = vadd.f32 %v656, 1.0
    %v658 = vrcp.pop %v657
    %v659 = vmul.f32 1.0, %v658
    %v660 = vmul.f32 %v652, %v487
    %v661 = vmul.f32 %v646, %v653
    %v662 = vadd.f32 %v660, %v661
    %v663 = vtanh.pop %v662
    %v664 = vmul.f32 %v659, %v663
    %s665 = scalar_lea.vmem [#allocation3], 8
    %666 = vst [vmem:[%s665] sm:$0xff] %v664
    %v667 = vld [vmem:[%s221] sm:$0xff]
    %v668 = vld [vmem:[%s221 + $0x8] sm:$0xff]
    %v669 = vld [vmem:[%s221 + $0x10] sm:$0xff]
    %v670 = vld [vmem:[%s221 + $0x18] sm:$0xff]
    %671 = vmatprep.subr.mxu0 %v64
    %672 = vmatpush1.msra.mxu0 %v63
    %673 = vmatprep.subr.mxu0 %v68
    %674 = vmatpush1.msra.mxu0 %v67
    %675 = vmatprep.subr.mxu0 %v72
    %676 = vmatpush1.msra.mxu0 %v71
    %677 = vmatprep.subr.mxu0 %v76
    %678 = vmatpush1.msra.mxu0 %v75
    %679 = vmatprep.subr.mxu0 %v80
    %680 = vmatpush1.msra.mxu0 %v79
    %681 = vmatprep.subr.mxu0 %v84
    %682 = vmatpush1.msra.mxu0 %v83
    %683 = vmatprep.subr.mxu0 %v88
    %684 = vmatpush1.msra.mxu0 %v87
    %685 = vmatprep.subr.mxu0 %v92
    %686 = vmatpush1.msra.mxu0 %v91
    %687 = vmatprep.subr.mxu0 %v96
    %688 = vmatpush1.msra.mxu0 %v95
    %689 = vmatprep.subr.mxu0 %v100
    %690 = vmatpush1.msra.mxu0 %v99
    %691 = vmatprep.subr.mxu0 %v104
    %692 = vmatpush1.msra.mxu0 %v103
    %693 = vmatprep.subr.mxu0 %v108
    %694 = vmatpush1.msra.mxu0 %v107
    %695 = vmatprep.subr.mxu0 %v112
    %696 = vmatpush1.msra.mxu0 %v111
    %697 = vmatprep.subr.mxu0 %v116
    %698 = vmatpush1.msra.mxu0 %v115
    %699 = vmatprep.subr.mxu0 %v120
    %700 = vmatpush1.msra.mxu0 %v119
    %701 = vmatprep.subr.mxu0 %v124
    %702 = vmatpush1.msra.mxu0 %v123
    %703 = vmatprep.subr.mxu0 0.0
    %704 = vmatpush1.msra.mxu0 0.0
    %705 = vmatprep.subr.mxu0 0.0
    %706 = vmatpush1.msra.mxu0 0.0
    %707 = vmatprep.subr.mxu0 0.0
    %708 = vmatpush1.msra.mxu0 0.0
    %709 = vmatprep.subr.mxu0 0.0
    %710 = vmatpush1.msra.mxu0 0.0
    %711 = vmatprep.subr.mxu0 0.0
    %712 = vmatpush1.msra.mxu0 0.0
    %713 = vmatprep.subr.mxu0 0.0
    %714 = vmatpush1.msra.mxu0 0.0
    %715 = vmatprep.subr.mxu0 0.0
    %716 = vmatpush1.msra.mxu0 0.0
    %717 = vmatprep.subr.mxu0 0.0
    %718 = vmatpush1.msra.mxu0 0.0
    %719 = vmatprep.subr.mxu0 0.0
    %720 = vmatpush1.msra.mxu0 0.0
    %721 = vmatprep.subr.mxu0 0.0
    %722 = vmatpush1.msra.mxu0 0.0
    %723 = vmatprep.subr.mxu0 0.0
    %724 = vmatpush1.msra.mxu0 0.0
    %725 = vmatprep.subr.mxu0 0.0
    %726 = vmatpush1.msra.mxu0 0.0
    %727 = vmatprep.subr.mxu0 0.0
    %728 = vmatpush1.msra.mxu0 0.0
    %729 = vmatprep.subr.mxu0 0.0
    %730 = vmatpush1.msra.mxu0 0.0
    %731 = vmatprep.subr.mxu0 0.0
    %732 = vmatpush1.msra.mxu0 0.0
    %733 = vmatprep.subr.mxu0 0.0
    %734 = vmatpush1.msra.mxu0 0.0
    %735 = vmatprep.mubr.f32.mxu0 0.0
    %736 = vmatmul.mubr.f32.gmra.mrb[0].mxu0 %v664
    %v737 = vpop.f32.mrb[0].mxu0
    %v738 = vadd.f32 0.0, %v737
    %v739 = vpop.f32.mrb[0].mxu0
    %v740 = vadd.f32 0.0, %v739
    %741 = vdwg.mxu0
    %742 = vmatprep.subr.mxu0 %v66
    %743 = vmatpush1.msra.mxu0 %v65
    %744 = vmatprep.subr.mxu0 %v70
    %745 = vmatpush1.msra.mxu0 %v69
    %746 = vmatprep.subr.mxu0 %v74
    %747 = vmatpush1.msra.mxu0 %v73
    %748 = vmatprep.subr.mxu0 %v78
    %749 = vmatpush1.msra.mxu0 %v77
    %750 = vmatprep.subr.mxu0 %v82
    %751 = vmatpush1.msra.mxu0 %v81
    %752 = vmatprep.subr.mxu0 %v86
    %753 = vmatpush1.msra.mxu0 %v85
    %754 = vmatprep.subr.mxu0 %v90
    %755 = vmatpush1.msra.mxu0 %v89
    %756 = vmatprep.subr.mxu0 %v94
    %757 = vmatpush1.msra.mxu0 %v93
    %758 = vmatprep.subr.mxu0 %v98
    %759 = vmatpush1.msra.mxu0 %v97
    %760 = vmatprep.subr.mxu0 %v102
    %761 = vmatpush1.msra.mxu0 %v101
    %762 = vmatprep.subr.mxu0 %v106
    %763 = vmatpush1.msra.mxu0 %v105
    %764 = vmatprep.subr.mxu0 %v110
    %765 = vmatpush1.msra.mxu0 %v109
    %766 = vmatprep.subr.mxu0 %v114
    %767 = vmatpush1.msra.mxu0 %v113
    %768 = vmatprep.subr.mxu0 %v118
    %769 = vmatpush1.msra.mxu0 %v117
    %770 = vmatprep.subr.mxu0 %v122
    %771 = vmatpush1.msra.mxu0 %v121
    %772 = vmatprep.subr.mxu0 %v126
    %773 = vmatpush1.msra.mxu0 %v125
    %774 = vmatprep.subr.mxu0 0.0
    %775 = vmatpush1.msra.mxu0 0.0
    %776 = vmatprep.subr.mxu0 0.0
    %777 = vmatpush1.msra.mxu0 0.0
    %778 = vmatprep.subr.mxu0 0.0
    %779 = vmatpush1.msra.mxu0 0.0
    %780 = vmatprep.subr.mxu0 0.0
    %781 = vmatpush1.msra.mxu0 0.0
    %782 = vmatprep.subr.mxu0 0.0
    %783 = vmatpush1.msra.mxu0 0.0
    %784 = vmatprep.subr.mxu0 0.0
    %785 = vmatpush1.msra.mxu0 0.0
    %786 = vmatprep.subr.mxu0 0.0
    %787 = vmatpush1.msra.mxu0 0.0
    %788 = vmatprep.subr.mxu0 0.0
    %789 = vmatpush1.msra.mxu0 0.0
    %790 = vmatprep.subr.mxu0 0.0
    %791 = vmatpush1.msra.mxu0 0.0
    %792 = vmatprep.subr.mxu0 0.0
    %793 = vmatpush1.msra.mxu0 0.0
    %794 = vmatprep.subr.mxu0 0.0
    %795 = vmatpush1.msra.mxu0 0.0
    %796 = vmatprep.subr.mxu0 0.0
    %797 = vmatpush1.msra.mxu0 0.0
    %798 = vmatprep.subr.mxu0 0.0
    %799 = vmatpush1.msra.mxu0 0.0
    %800 = vmatprep.subr.mxu0 0.0
    %801 = vmatpush1.msra.mxu0 0.0
    %802 = vmatprep.subr.mxu0 0.0
    %803 = vmatpush1.msra.mxu0 0.0
    %804 = vmatprep.subr.mxu0 0.0
    %805 = vmatpush1.msra.mxu0 0.0
    %806 = vmatprep.mubr.f32.mxu0 0.0
    %807 = vmatmul.mubr.f32.gmra.mrb[0].mxu0 %v664
    %v808 = vpop.f32.mrb[0].mxu0
    %v809 = vadd.f32 0.0, %v808
    %v810 = vpop.f32.mrb[0].mxu0
    %v811 = vadd.f32 0.0, %v810
    %812 = vdwg.mxu0
    %v813 = vadd.f32 %v667, %v738
    %v814 = vadd.f32 %v668, %v740
    %v815 = vadd.f32 %v669, %v809
    %v816 = vadd.f32 %v670, %v811
    %v817 = vxor.u32 %v813, 2147483648
    %v818 = vmul.f32 %v817, 1.442695
    %v819 = vpow.pop %v818
    %v820 = vadd.f32 %v819, 1.0
    %v821 = vrcp.pop %v820
    %v822 = vmul.f32 1.0, %v821
    %v823 = vxor.u32 %v814, 2147483648
    %v824 = vmul.f32 %v823, 1.442695
    %v825 = vpow.pop %v824
    %v826 = vadd.f32 %v825, 1.0
    %v827 = vrcp.pop %v826
    %v828 = vmul.f32 1.0, %v827
    %v829 = vtanh.pop %v815
    %v830 = vxor.u32 %v816, 2147483648
    %v831 = vmul.f32 %v830, 1.442695
    %v832 = vpow.pop %v831
    %v833 = vadd.f32 %v832, 1.0
    %v834 = vrcp.pop %v833
    %v835 = vmul.f32 1.0, %v834
    %v836 = vmul.f32 %v828, %v662
    %v837 = vmul.f32 %v822, %v829
    %v838 = vadd.f32 %v836, %v837
    %v839 = vtanh.pop %v838
    %v840 = vmul.f32 %v835, %v839
    %s841 = scalar_lea.vmem [#allocation3], 16
    %842 = vst [vmem:[%s841] sm:$0xff] %v840
    %v843 = vld [vmem:[%s239] sm:$0xff]
    %v844 = vld [vmem:[%s239 + $0x8] sm:$0xff]
    %v845 = vld [vmem:[%s239 + $0x10] sm:$0xff]
    %v846 = vld [vmem:[%s239 + $0x18] sm:$0xff]
    %847 = vmatprep.subr.mxu0 %v64
    %848 = vmatpush1.msra.mxu0 %v63
    %849 = vmatprep.subr.mxu0 %v68
    %850 = vmatpush1.msra.mxu0 %v67
    %851 = vmatprep.subr.mxu0 %v72
    %852 = vmatpush1.msra.mxu0 %v71
    %853 = vmatprep.subr.mxu0 %v76
    %854 = vmatpush1.msra.mxu0 %v75
    %855 = vmatprep.subr.mxu0 %v80
    %856 = vmatpush1.msra.mxu0 %v79
    %857 = vmatprep.subr.mxu0 %v84
    %858 = vmatpush1.msra.mxu0 %v83
    %859 = vmatprep.subr.mxu0 %v88
    %860 = vmatpush1.msra.mxu0 %v87
    %861 = vmatprep.subr.mxu0 %v92
    %862 = vmatpush1.msra.mxu0 %v91
    %863 = vmatprep.subr.mxu0 %v96
    %864 = vmatpush1.msra.mxu0 %v95
    %865 = vmatprep.subr.mxu0 %v100
    %866 = vmatpush1.msra.mxu0 %v99
    %867 = vmatprep.subr.mxu0 %v104
    %868 = vmatpush1.msra.mxu0 %v103
    %869 = vmatprep.subr.mxu0 %v108
    %870 = vmatpush1.msra.mxu0 %v107
    %871 = vmatprep.subr.mxu0 %v112
    %872 = vmatpush1.msra.mxu0 %v111
    %873 = vmatprep.subr.mxu0 %v116
    %874 = vmatpush1.msra.mxu0 %v115
    %875 = vmatprep.subr.mxu0 %v120
    %876 = vmatpush1.msra.mxu0 %v119
    %877 = vmatprep.subr.mxu0 %v124
    %878 = vmatpush1.msra.mxu0 %v123
    %879 = vmatprep.subr.mxu0 0.0
    %880 = vmatpush1.msra.mxu0 0.0
    %881 = vmatprep.subr.mxu0 0.0
    %882 = vmatpush1.msra.mxu0 0.0
    %883 = vmatprep.subr.mxu0 0.0
    %884 = vmatpush1.msra.mxu0 0.0
    %885 = vmatprep.subr.mxu0 0.0
    %886 = vmatpush1.msra.mxu0 0.0
    %887 = vmatprep.subr.mxu0 0.0
    %888 = vmatpush1.msra.mxu0 0.0
    %889 = vmatprep.subr.mxu0 0.0
    %890 = vmatpush1.msra.mxu0 0.0
    %891 = vmatprep.subr.mxu0 0.0
    %892 = vmatpush1.msra.mxu0 0.0
    %893 = vmatprep.subr.mxu0 0.0
    %894 = vmatpush1.msra.mxu0 0.0
    %895 = vmatprep.subr.mxu0 0.0
    %896 = vmatpush1.msra.mxu0 0.0
    %897 = vmatprep.subr.mxu0 0.0
    %898 = vmatpush1.msra.mxu0 0.0
    %899 = vmatprep.subr.mxu0 0.0
    %900 = vmatpush1.msra.mxu0 0.0
    %901 = vmatprep.subr.mxu0 0.0
    %902 = vmatpush1.msra.mxu0 0.0
    %903 = vmatprep.subr.mxu0 0.0
    %904 = vmatpush1.msra.mxu0 0.0
    %905 = vmatprep.subr.mxu0 0.0
    %906 = vmatpush1.msra.mxu0 0.0
    %907 = vmatprep.subr.mxu0 0.0
    %908 = vmatpush1.msra.mxu0 0.0
    %909 = vmatprep.subr.mxu0 0.0
    %910 = vmatpush1.msra.mxu0 0.0
    %911 = vmatprep.mubr.f32.mxu0 0.0
    %912 = vmatmul.mubr.f32.gmra.mrb[0].mxu0 %v840
    %v913 = vpop.f32.mrb[0].mxu0
    %v914 = vadd.f32 0.0, %v913
    %v915 = vpop.f32.mrb[0].mxu0
    %v916 = vadd.f32 0.0, %v915
    %917 = vdwg.mxu0
    %918 = vmatprep.subr.mxu0 %v66
    %919 = vmatpush1.msra.mxu0 %v65
    %920 = vmatprep.subr.mxu0 %v70
    %921 = vmatpush1.msra.mxu0 %v69
    %922 = vmatprep.subr.mxu0 %v74
    %923 = vmatpush1.msra.mxu0 %v73
    %924 = vmatprep.subr.mxu0 %v78
    %925 = vmatpush1.msra.mxu0 %v77
    %926 = vmatprep.subr.mxu0 %v82
    %927 = vmatpush1.msra.mxu0 %v81
    %928 = vmatprep.subr.mxu0 %v86
    %929 = vmatpush1.msra.mxu0 %v85
    %930 = vmatprep.subr.mxu0 %v90
    %931 = vmatpush1.msra.mxu0 %v89
    %932 = vmatprep.subr.mxu0 %v94
    %933 = vmatpush1.msra.mxu0 %v93
    %934 = vmatprep.subr.mxu0 %v98
    %935 = vmatpush1.msra.mxu0 %v97
    %936 = vmatprep.subr.mxu0 %v102
    %937 = vmatpush1.msra.mxu0 %v101
    %938 = vmatprep.subr.mxu0 %v106
    %939 = vmatpush1.msra.mxu0 %v105
    %940 = vmatprep.subr.mxu0 %v110
    %941 = vmatpush1.msra.mxu0 %v109
    %942 = vmatprep.subr.mxu0 %v114
    %943 = vmatpush1.msra.mxu0 %v113
    %944 = vmatprep.subr.mxu0 %v118
    %945 = vmatpush1.msra.mxu0 %v117
    %946 = vmatprep.subr.mxu0 %v122
    %947 = vmatpush1.msra.mxu0 %v121
    %948 = vmatprep.subr.mxu0 %v126
    %949 = vmatpush1.msra.mxu0 %v125
    %950 = vmatprep.subr.mxu0 0.0
    %951 = vmatpush1.msra.mxu0 0.0
    %952 = vmatprep.subr.mxu0 0.0
    %953 = vmatpush1.msra.mxu0 0.0
    %954 = vmatprep.subr.mxu0 0.0
    %955 = vmatpush1.msra.mxu0 0.0
    %956 = vmatprep.subr.mxu0 0.0
    %957 = vmatpush1.msra.mxu0 0.0
    %958 = vmatprep.subr.mxu0 0.0
    %959 = vmatpush1.msra.mxu0 0.0
    %960 = vmatprep.subr.mxu0 0.0
    %961 = vmatpush1.msra.mxu0 0.0
    %962 = vmatprep.subr.mxu0 0.0
    %963 = vmatpush1.msra.mxu0 0.0
    %964 = vmatprep.subr.mxu0 0.0
    %965 = vmatpush1.msra.mxu0 0.0
    %966 = vmatprep.subr.mxu0 0.0
    %967 = vmatpush1.msra.mxu0 0.0
    %968 = vmatprep.subr.mxu0 0.0
    %969 = vmatpush1.msra.mxu0 0.0
    %970 = vmatprep.subr.mxu0 0.0
    %971 = vmatpush1.msra.mxu0 0.0
    %972 = vmatprep.subr.mxu0 0.0
    %973 = vmatpush1.msra.mxu0 0.0
    %974 = vmatprep.subr.mxu0 0.0
    %975 = vmatpush1.msra.mxu0 0.0
    %976 = vmatprep.subr.mxu0 0.0
    %977 = vmatpush1.msra.mxu0 0.0
    %978 = vmatprep.subr.mxu0 0.0
    %979 = vmatpush1.msra.mxu0 0.0
    %980 = vmatprep.subr.mxu0 0.0
    %981 = vmatpush1.msra.mxu0 0.0
    %982 = vmatprep.mubr.f32.mxu0 0.0
    %983 = vmatmul.mubr.f32.gmra.mrb[0].mxu0 %v840
    %v984 = vpop.f32.mrb[0].mxu0
    %v985 = vadd.f32 0.0, %v984
    %v986 = vpop.f32.mrb[0].mxu0
    %v987 = vadd.f32 0.0, %v986
    %988 = vdwg.mxu0
    %v989 = vadd.f32 %v843, %v914
    %v990 = vadd.f32 %v844, %v916
    %v991 = vadd.f32 %v845, %v985
    %v992 = vadd.f32 %v846, %v987
    %v993 = vxor.u32 %v989, 2147483648
    %v994 = vmul.f32 %v993, 1.442695
    %v995 = vpow.pop %v994
    %v996 = vadd.f32 %v995, 1.0
    %v997 = vrcp.pop %v996
    %v998 = vmul.f32 1.0, %v997
    %v999 = vxor.u32 %v990, 2147483648
    %v1000 = vmul.f32 %v999, 1.442695
    %v1001 = vpow.pop %v1000
    %v1002 = vadd.f32 %v1001, 1.0
    %v1003 = vrcp.pop %v1002
    %v1004 = vmul.f32 1.0, %v1003
    %v1005 = vtanh.pop %v991
    %v1006 = vxor.u32 %v992, 2147483648
    %v1007 = vmul.f32 %v1006, 1.442695
    %v1008 = vpow.pop %v1007
    %v1009 = vadd.f32 %v1008, 1.0
    %v1010 = vrcp.pop %v1009
    %v1011 = vmul.f32 1.0, %v1010
    %v1012 = vmul.f32 %v1004, %v838
    %v1013 = vmul.f32 %v998, %v1005
    %v1014 = vadd.f32 %v1012, %v1013
    %v1015 = vtanh.pop %v1014
    %v1016 = vmul.f32 %v1011, %v1015
    %s1017 = scalar_lea.vmem [#allocation3], 24
    %1018 = vst [vmem:[%s1017] sm:$0xff] %v1016
    %v1019 = vld [vmem:[%s257] sm:$0xff]
    %v1020 = vld [vmem:[%s257 + $0x8] sm:$0xff]
    %v1021 = vld [vmem:[%s257 + $0x10] sm:$0xff]
    %v1022 = vld [vmem:[%s257 + $0x18] sm:$0xff]
    %1023 = vmatprep.subr.mxu0 %v64
    %1024 = vmatpush1.msra.mxu0 %v63
    %1025 = vmatprep.subr.mxu0 %v68
    %1026 = vmatpush1.msra.mxu0 %v67
    %1027 = vmatprep.subr.mxu0 %v72
    %1028 = vmatpush1.msra.mxu0 %v71
    %1029 = vmatprep.subr.mxu0 %v76
    %1030 = vmatpush1.msra.mxu0 %v75
    %1031 = vmatprep.subr.mxu0 %v80
    %1032 = vmatpush1.msra.mxu0 %v79
    %1033 = vmatprep.subr.mxu0 %v84
    %1034 = vmatpush1.msra.mxu0 %v83
    %1035 = vmatprep.subr.mxu0 %v88
    %1036 = vmatpush1.msra.mxu0 %v87
    %1037 = vmatprep.subr.mxu0 %v92
    %1038 = vmatpush1.msra.mxu0 %v91
    %1039 = vmatprep.subr.mxu0 %v96
    %1040 = vmatpush1.msra.mxu0 %v95
    %1041 = vmatprep.subr.mxu0 %v100
    %1042 = vmatpush1.msra.mxu0 %v99
    %1043 = vmatprep.subr.mxu0 %v104
    %1044 = vmatpush1.msra.mxu0 %v103
    %1045 = vmatprep.subr.mxu0 %v108
    %1046 = vmatpush1.msra.mxu0 %v107
    %1047 = vmatprep.subr.mxu0 %v112
    %1048 = vmatpush1.msra.mxu0 %v111
    %1049 = vmatprep.subr.mxu0 %v116
    %1050 = vmatpush1.msra.mxu0 %v115
    %1051 = vmatprep.subr.mxu0 %v120
    %1052 = vmatpush1.msra.mxu0 %v119
    %1053 = vmatprep.subr.mxu0 %v124
    %1054 = vmatpush1.msra.mxu0 %v123
    %1055 = vmatprep.subr.mxu0 0.0
    %1056 = vmatpush1.msra.mxu0 0.0
    %1057 = vmatprep.subr.mxu0 0.0
    %1058 = vmatpush1.msra.mxu0 0.0
    %1059 = vmatprep.subr.mxu0 0.0
    %1060 = vmatpush1.msra.mxu0 0.0
    %1061 = vmatprep.subr.mxu0 0.0
    %1062 = vmatpush1.msra.mxu0 0.0
    %1063 = vmatprep.subr.mxu0 0.0
    %1064 = vmatpush1.msra.mxu0 0.0
    %1065 = vmatprep.subr.mxu0 0.0
    %1066 = vmatpush1.msra.mxu0 0.0
    %1067 = vmatprep.subr.mxu0 0.0
    %1068 = vmatpush1.msra.mxu0 0.0
    %1069 = vmatprep.subr.mxu0 0.0
    %1070 = vmatpush1.msra.mxu0 0.0
    %1071 = vmatprep.subr.mxu0 0.0
    %1072 = vmatpush1.msra.mxu0 0.0
    %1073 = vmatprep.subr.mxu0 0.0
    %1074 = vmatpush1.msra.mxu0 0.0
    %1075 = vmatprep.subr.mxu0 0.0
    %1076 = vmatpush1.msra.mxu0 0.0
    %1077 = vmatprep.subr.mxu0 0.0
    %1078 = vmatpush1.msra.mxu0 0.0
    %1079 = vmatprep.subr.mxu0 0.0
    %1080 = vmatpush1.msra.mxu0 0.0
    %1081 = vmatprep.subr.mxu0 0.0
    %1082 = vmatpush1.msra.mxu0 0.0
    %1083 = vmatprep.subr.mxu0 0.0
    %1084 = vmatpush1.msra.mxu0 0.0
    %1085 = vmatprep.subr.mxu0 0.0
    %1086 = vmatpush1.msra.mxu0 0.0
    %1087 = vmatprep.mubr.f32.mxu0 0.0
    %1088 = vmatmul.mubr.f32.gmra.mrb[0].mxu0 %v1016
    %v1089 = vpop.f32.mrb[0].mxu0
    %v1090 = vadd.f32 0.0, %v1089
    %v1091 = vpop.f32.mrb[0].mxu0
    %v1092 = vadd.f32 0.0, %v1091
    %1093 = vdwg.mxu0
    %1094 = vmatprep.subr.mxu0 %v66
    %1095 = vmatpush1.msra.mxu0 %v65
    %1096 = vmatprep.subr.mxu0 %v70
    %1097 = vmatpush1.msra.mxu0 %v69
    %1098 = vmatprep.subr.mxu0 %v74
    %1099 = vmatpush1.msra.mxu0 %v73
    %1100 = vmatprep.subr.mxu0 %v78
    %1101 = vmatpush1.msra.mxu0 %v77
    %1102 = vmatprep.subr.mxu0 %v82
    %1103 = vmatpush1.msra.mxu0 %v81
    %1104 = vmatprep.subr.mxu0 %v86
    %1105 = vmatpush1.msra.mxu0 %v85
    %1106 = vmatprep.subr.mxu0 %v90
    %1107 = vmatpush1.msra.mxu0 %v89
    %1108 = vmatprep.subr.mxu0 %v94
    %1109 = vmatpush1.msra.mxu0 %v93
    %1110 = vmatprep.subr.mxu0 %v98
    %1111 = vmatpush1.msra.mxu0 %v97
    %1112 = vmatprep.subr.mxu0 %v102
    %1113 = vmatpush1.msra.mxu0 %v101
    %1114 = vmatprep.subr.mxu0 %v106
    %1115 = vmatpush1.msra.mxu0 %v105
    %1116 = vmatprep.subr.mxu0 %v110
    %1117 = vmatpush1.msra.mxu0 %v109
    %1118 = vmatprep.subr.mxu0 %v114
    %1119 = vmatpush1.msra.mxu0 %v113
    %1120 = vmatprep.subr.mxu0 %v118
    %1121 = vmatpush1.msra.mxu0 %v117
    %1122 = vmatprep.subr.mxu0 %v122
    %1123 = vmatpush1.msra.mxu0 %v121
    %1124 = vmatprep.subr.mxu0 %v126
    %1125 = vmatpush1.msra.mxu0 %v125
    %1126 = vmatprep.subr.mxu0 0.0
    %1127 = vmatpush1.msra.mxu0 0.0
    %1128 = vmatprep.subr.mxu0 0.0
    %1129 = vmatpush1.msra.mxu0 0.0
    %1130 = vmatprep.subr.mxu0 0.0
    %1131 = vmatpush1.msra.mxu0 0.0
    %1132 = vmatprep.subr.mxu0 0.0
    %1133 = vmatpush1.msra.mxu0 0.0
    %1134 = vmatprep.subr.mxu0 0.0
    %1135 = vmatpush1.msra.mxu0 0.0
    %1136 = vmatprep.subr.mxu0 0.0
    %1137 = vmatpush1.msra.mxu0 0.0
    %1138 = vmatprep.subr.mxu0 0.0
    %1139 = vmatpush1.msra.mxu0 0.0
    %1140 = vmatprep.subr.mxu0 0.0
    %1141 = vmatpush1.msra.mxu0 0.0
    %1142 = vmatprep.subr.mxu0 0.0
    %1143 = vmatpush1.msra.mxu0 0.0
    %1144 = vmatprep.subr.mxu0 0.0
    %1145 = vmatpush1.msra.mxu0 0.0
    %1146 = vmatprep.subr.mxu0 0.0
    %1147 = vmatpush1.msra.mxu0 0.0
    %1148 = vmatprep.subr.mxu0 0.0
    %1149 = vmatpush1.msra.mxu0 0.0
    %1150 = vmatprep.subr.mxu0 0.0
    %1151 = vmatpush1.msra.mxu0 0.0
    %1152 = vmatprep.subr.mxu0 0.0
    %1153 = vmatpush1.msra.mxu0 0.0
    %1154 = vmatprep.subr.mxu0 0.0
    %1155 = vmatpush1.msra.mxu0 0.0
    %1156 = vmatprep.subr.mxu0 0.0
    %1157 = vmatpush1.msra.mxu0 0.0
    %1158 = vmatprep.mubr.f32.mxu0 0.0
    %1159 = vmatmul.mubr.f32.gmra.mrb[0].mxu0 %v1016
    %v1160 = vpop.f32.mrb[0].mxu0
    %v1161 = vadd.f32 0.0, %v1160
    %v1162 = vpop.f32.mrb[0].mxu0
    %v1163 = vadd.f32 0.0, %v1162
    %1164 = vdwg.mxu0
    %v1165 = vadd.f32 %v1019, %v1090
    %v1166 = vadd.f32 %v1020, %v1092
    %v1167 = vadd.f32 %v1021, %v1161
    %v1168 = vadd.f32 %v1022, %v1163
    %v1169 = vxor.u32 %v1165, 2147483648
    %v1170 = vmul.f32 %v1169, 1.442695
    %v1171 = vpow.pop %v1170
    %v1172 = vadd.f32 %v1171, 1.0
    %v1173 = vrcp.pop %v1172
    %v1174 = vmul.f32 1.0, %v1173
    %v1175 = vxor.u32 %v1166, 2147483648
    %v1176 = vmul.f32 %v1175, 1.442695
    %v1177 = vpow.pop %v1176
    %v1178 = vadd.f32 %v1177, 1.0
    %v1179 = vrcp.pop %v1178
    %v1180 = vmul.f32 1.0, %v1179
    %v1181 = vtanh.pop %v1167
    %v1182 = vxor.u32 %v1168, 2147483648
    %v1183 = vmul.f32 %v1182, 1.442695
    %v1184 = vpow.pop %v1183
    %v1185 = vadd.f32 %v1184, 1.0
    %v1186 = vrcp.pop %v1185
    %v1187 = vmul.f32 1.0, %v1186
    %v1188 = vmul.f32 %v1180, %v1014
    %v1189 = vmul.f32 %v1174, %v1181
    %v1190 = vadd.f32 %v1188, %v1189
    %v1191 = vtanh.pop %v1190
    %v1192 = vmul.f32 %v1187, %v1191
    %s1193 = scalar_lea.vmem [#allocation3], 32
    %1194 = vst [vmem:[%s1193] sm:$0xff] %v1192
    %v1195 = vld [vmem:[%s275] sm:$0xff]
    %v1196 = vld [vmem:[%s275 + $0x8] sm:$0xff]
    %v1197 = vld [vmem:[%s275 + $0x10] sm:$0xff]
    %v1198 = vld [vmem:[%s275 + $0x18] sm:$0xff]
    %1199 = vmatprep.subr.mxu0 %v64
    %1200 = vmatpush1.msra.mxu0 %v63
    %1201 = vmatprep.subr.mxu0 %v68
    %1202 = vmatpush1.msra.mxu0 %v67
    %1203 = vmatprep.subr.mxu0 %v72
    %1204 = vmatpush1.msra.mxu0 %v71
    %1205 = vmatprep.subr.mxu0 %v76
    %1206 = vmatpush1.msra.mxu0 %v75
    %1207 = vmatprep.subr.mxu0 %v80
    %1208 = vmatpush1.msra.mxu0 %v79
    %1209 = vmatprep.subr.mxu0 %v84
    %1210 = vmatpush1.msra.mxu0 %v83
    %1211 = vmatprep.subr.mxu0 %v88
    %1212 = vmatpush1.msra.mxu0 %v87
    %1213 = vmatprep.subr.mxu0 %v92
    %1214 = vmatpush1.msra.mxu0 %v91
    %1215 = vmatprep.subr.mxu0 %v96
    %1216 = vmatpush1.msra.mxu0 %v95
    %1217 = vmatprep.subr.mxu0 %v100
    %1218 = vmatpush1.msra.mxu0 %v99
    %1219 = vmatprep.subr.mxu0 %v104
    %1220 = vmatpush1.msra.mxu0 %v103
    %1221 = vmatprep.subr.mxu0 %v108
    %1222 = vmatpush1.msra.mxu0 %v107
    %1223 = vmatprep.subr.mxu0 %v112
    %1224 = vmatpush1.msra.mxu0 %v111
    %1225 = vmatprep.subr.mxu0 %v116
    %1226 = vmatpush1.msra.mxu0 %v115
    %1227 = vmatprep.subr.mxu0 %v120
    %1228 = vmatpush1.msra.mxu0 %v119
    %1229 = vmatprep.subr.mxu0 %v124
    %1230 = vmatpush1.msra.mxu0 %v123
    %1231 = vmatprep.subr.mxu0 0.0
    %1232 = vmatpush1.msra.mxu0 0.0
    %1233 = vmatprep.subr.mxu0 0.0
    %1234 = vmatpush1.msra.mxu0 0.0
    %1235 = vmatprep.subr.mxu0 0.0
    %1236 = vmatpush1.msra.mxu0 0.0
    %1237 = vmatprep.subr.mxu0 0.0
    %1238 = vmatpush1.msra.mxu0 0.0
    %1239 = vmatprep.subr.mxu0 0.0
    %1240 = vmatpush1.msra.mxu0 0.0
    %1241 = vmatprep.subr.mxu0 0.0
    %1242 = vmatpush1.msra.mxu0 0.0
    %1243 = vmatprep.subr.mxu0 0.0
    %1244 = vmatpush1.msra.mxu0 0.0
    %1245 = vmatprep.subr.mxu0 0.0
    %1246 = vmatpush1.msra.mxu0 0.0
    %1247 = vmatprep.subr.mxu0 0.0
    %1248 = vmatpush1.msra.mxu0 0.0
    %1249 = vmatprep.subr.mxu0 0.0
    %1250 = vmatpush1.msra.mxu0 0.0
    %1251 = vmatprep.subr.mxu0 0.0
    %1252 = vmatpush1.msra.mxu0 0.0
    %1253 = vmatprep.subr.mxu0 0.0
    %1254 = vmatpush1.msra.mxu0 0.0
    %1255 = vmatprep.subr.mxu0 0.0
    %1256 = vmatpush1.msra.mxu0 0.0
    %1257 = vmatprep.subr.mxu0 0.0
    %1258 = vmatpush1.msra.mxu0 0.0
    %1259 = vmatprep.subr.mxu0 0.0
    %1260 = vmatpush1.msra.mxu0 0.0
    %1261 = vmatprep.subr.mxu0 0.0
    %1262 = vmatpush1.msra.mxu0 0.0
    %1263 = vmatprep.mubr.f32.mxu0 0.0
    %1264 = vmatmul.mubr.f32.gmra.mrb[0].mxu0 %v1192
    %v1265 = vpop.f32.mrb[0].mxu0
    %v1266 = vadd.f32 0.0, %v1265
    %v1267 = vpop.f32.mrb[0].mxu0
    %v1268 = vadd.f32 0.0, %v1267
    %1269 = vdwg.mxu0
    %1270 = vmatprep.subr.mxu0 %v66
    %1271 = vmatpush1.msra.mxu0 %v65
    %1272 = vmatprep.subr.mxu0 %v70
    %1273 = vmatpush1.msra.mxu0 %v69
    %1274 = vmatprep.subr.mxu0 %v74
    %1275 = vmatpush1.msra.mxu0 %v73
    %1276 = vmatprep.subr.mxu0 %v78
    %1277 = vmatpush1.msra.mxu0 %v77
    %1278 = vmatprep.subr.mxu0 %v82
    %1279 = vmatpush1.msra.mxu0 %v81
    %1280 = vmatprep.subr.mxu0 %v86
    %1281 = vmatpush1.msra.mxu0 %v85
    %1282 = vmatprep.subr.mxu0 %v90
    %1283 = vmatpush1.msra.mxu0 %v89
    %1284 = vmatprep.subr.mxu0 %v94
    %1285 = vmatpush1.msra.mxu0 %v93
    %1286 = vmatprep.subr.mxu0 %v98
    %1287 = vmatpush1.msra.mxu0 %v97
    %1288 = vmatprep.subr.mxu0 %v102
    %1289 = vmatpush1.msra.mxu0 %v101
    %1290 = vmatprep.subr.mxu0 %v106
    %1291 = vmatpush1.msra.mxu0 %v105
    %1292 = vmatprep.subr.mxu0 %v110
    %1293 = vmatpush1.msra.mxu0 %v109
    %1294 = vmatprep.subr.mxu0 %v114
    %1295 = vmatpush1.msra.mxu0 %v113
    %1296 = vmatprep.subr.mxu0 %v118
    %1297 = vmatpush1.msra.mxu0 %v117
    %1298 = vmatprep.subr.mxu0 %v122
    %1299 = vmatpush1.msra.mxu0 %v121
    %1300 = vmatprep.subr.mxu0 %v126
    %1301 = vmatpush1.msra.mxu0 %v125
    %1302 = vmatprep.subr.mxu0 0.0
    %1303 = vmatpush1.msra.mxu0 0.0
    %1304 = vmatprep.subr.mxu0 0.0
    %1305 = vmatpush1.msra.mxu0 0.0
    %1306 = vmatprep.subr.mxu0 0.0
    %1307 = vmatpush1.msra.mxu0 0.0
    %1308 = vmatprep.subr.mxu0 0.0
    %1309 = vmatpush1.msra.mxu0 0.0
    %1310 = vmatprep.subr.mxu0 0.0
    %1311 = vmatpush1.msra.mxu0 0.0
    %1312 = vmatprep.subr.mxu0 0.0
    %1313 = vmatpush1.msra.mxu0 0.0
    %1314 = vmatprep.subr.mxu0 0.0
    %1315 = vmatpush1.msra.mxu0 0.0
    %1316 = vmatprep.subr.mxu0 0.0
    %1317 = vmatpush1.msra.mxu0 0.0
    %1318 = vmatprep.subr.mxu0 0.0
    %1319 = vmatpush1.msra.mxu0 0.0
    %1320 = vmatprep.subr.mxu0 0.0
    %1321 = vmatpush1.msra.mxu0 0.0
    %1322 = vmatprep.subr.mxu0 0.0
    %1323 = vmatpush1.msra.mxu0 0.0
    %1324 = vmatprep.subr.mxu0 0.0
    %1325 = vmatpush1.msra.mxu0 0.0
    %1326 = vmatprep.subr.mxu0 0.0
    %1327 = vmatpush1.msra.mxu0 0.0
    %1328 = vmatprep.subr.mxu0 0.0
    %1329 = vmatpush1.msra.mxu0 0.0
    %1330 = vmatprep.subr.mxu0 0.0
    %1331 = vmatpush1.msra.mxu0 0.0
    %1332 = vmatprep.subr.mxu0 0.0
    %1333 = vmatpush1.msra.mxu0 0.0
    %1334 = vmatprep.mubr.f32.mxu0 0.0
    %1335 = vmatmul.mubr.f32.gmra.mrb[0].mxu0 %v1192
    %v1336 = vpop.f32.mrb[0].mxu0
    %v1337 = vadd.f32 0.0, %v1336
    %v1338 = vpop.f32.mrb[0].mxu0
    %v1339 = vadd.f32 0.0, %v1338
    %1340 = vdwg.mxu0
    %v1341 = vadd.f32 %v1195, %v1266
    %v1342 = vadd.f32 %v1196, %v1268
    %v1343 = vadd.f32 %v1197, %v1337
    %v1344 = vadd.f32 %v1198, %v1339
    %v1345 = vxor.u32 %v1341, 2147483648
    %v1346 = vmul.f32 %v1345, 1.442695
    %v1347 = vpow.pop %v1346
    %v1348 = vadd.f32 %v1347, 1.0
    %v1349 = vrcp.pop %v1348
    %v1350 = vmul.f32 1.0, %v1349
    %v1351 = vxor.u32 %v1342, 2147483648
    %v1352 = vmul.f32 %v1351, 1.442695
    %v1353 = vpow.pop %v1352
    %v1354 = vadd.f32 %v1353, 1.0
    %v1355 = vrcp.pop %v1354
    %v1356 = vmul.f32 1.0, %v1355
    %v1357 = vtanh.pop %v1343
    %v1358 = vxor.u32 %v1344, 2147483648
    %v1359 = vmul.f32 %v1358, 1.442695
    %v1360 = vpow.pop %v1359
    %v1361 = vadd.f32 %v1360, 1.0
    %v1362 = vrcp.pop %v1361
    %v1363 = vmul.f32 1.0, %v1362
    %v1364 = vmul.f32 %v1356, %v1190
    %v1365 = vmul.f32 %v1350, %v1357
    %v1366 = vadd.f32 %v1364, %v1365
    %v1367 = vtanh.pop %v1366
    %v1368 = vmul.f32 %v1363, %v1367
    %s1369 = scalar_lea.vmem [#allocation3], 40
    %1370 = vst [vmem:[%s1369] sm:$0xff] %v1368
    %v1371 = vld [vmem:[%s293] sm:$0xff]
    %v1372 = vld [vmem:[%s293 + $0x8] sm:$0xff]
    %v1373 = vld [vmem:[%s293 + $0x10] sm:$0xff]
    %v1374 = vld [vmem:[%s293 + $0x18] sm:$0xff]
    %1375 = vmatprep.subr.mxu0 %v64
    %1376 = vmatpush1.msra.mxu0 %v63
    %1377 = vmatprep.subr.mxu0 %v68
    %1378 = vmatpush1.msra.mxu0 %v67
    %1379 = vmatprep.subr.mxu0 %v72
    %1380 = vmatpush1.msra.mxu0 %v71
    %1381 = vmatprep.subr.mxu0 %v76
    %1382 = vmatpush1.msra.mxu0 %v75
    %1383 = vmatprep.subr.mxu0 %v80
    %1384 = vmatpush1.msra.mxu0 %v79
    %1385 = vmatprep.subr.mxu0 %v84
    %1386 = vmatpush1.msra.mxu0 %v83
    %1387 = vmatprep.subr.mxu0 %v88
    %1388 = vmatpush1.msra.mxu0 %v87
    %1389 = vmatprep.subr.mxu0 %v92
    %1390 = vmatpush1.msra.mxu0 %v91
    %1391 = vmatprep.subr.mxu0 %v96
    %1392 = vmatpush1.msra.mxu0 %v95
    %1393 = vmatprep.subr.mxu0 %v100
    %1394 = vmatpush1.msra.mxu0 %v99
    %1395 = vmatprep.subr.mxu0 %v104
    %1396 = vmatpush1.msra.mxu0 %v103
    %1397 = vmatprep.subr.mxu0 %v108
    %1398 = vmatpush1.msra.mxu0 %v107
    %1399 = vmatprep.subr.mxu0 %v112
    %1400 = vmatpush1.msra.mxu0 %v111
    %1401 = vmatprep.subr.mxu0 %v116
    %1402 = vmatpush1.msra.mxu0 %v115
    %1403 = vmatprep.subr.mxu0 %v120
    %1404 = vmatpush1.msra.mxu0 %v119
    %1405 = vmatprep.subr.mxu0 %v124
    %1406 = vmatpush1.msra.mxu0 %v123
    %1407 = vmatprep.subr.mxu0 0.0
    %1408 = vmatpush1.msra.mxu0 0.0
    %1409 = vmatprep.subr.mxu0 0.0
    %1410 = vmatpush1.msra.mxu0 0.0
    %1411 = vmatprep.subr.mxu0 0.0
    %1412 = vmatpush1.msra.mxu0 0.0
    %1413 = vmatprep.subr.mxu0 0.0
    %1414 = vmatpush1.msra.mxu0 0.0
    %1415 = vmatprep.subr.mxu0 0.0
    %1416 = vmatpush1.msra.mxu0 0.0
    %1417 = vmatprep.subr.mxu0 0.0
    %1418 = vmatpush1.msra.mxu0 0.0
    %1419 = vmatprep.subr.mxu0 0.0
    %1420 = vmatpush1.msra.mxu0 0.0
    %1421 = vmatprep.subr.mxu0 0.0
    %1422 = vmatpush1.msra.mxu0 0.0
    %1423 = vmatprep.subr.mxu0 0.0
    %1424 = vmatpush1.msra.mxu0 0.0
    %1425 = vmatprep.subr.mxu0 0.0
    %1426 = vmatpush1.msra.mxu0 0.0
    %1427 = vmatprep.subr.mxu0 0.0
    %1428 = vmatpush1.msra.mxu0 0.0
    %1429 = vmatprep.subr.mxu0 0.0
    %1430 = vmatpush1.msra.mxu0 0.0
    %1431 = vmatprep.subr.mxu0 0.0
    %1432 = vmatpush1.msra.mxu0 0.0
    %1433 = vmatprep.subr.mxu0 0.0
    %1434 = vmatpush1.msra.mxu0 0.0
    %1435 = vmatprep.subr.mxu0 0.0
    %1436 = vmatpush1.msra.mxu0 0.0
    %1437 = vmatprep.subr.mxu0 0.0
    %1438 = vmatpush1.msra.mxu0 0.0
    %1439 = vmatprep.mubr.f32.mxu0 0.0
    %1440 = vmatmul.mubr.f32.gmra.mrb[0].mxu0 %v1368
    %v1441 = vpop.f32.mrb[0].mxu0
    %v1442 = vadd.f32 0.0, %v1441
    %v1443 = vpop.f32.mrb[0].mxu0
    %v1444 = vadd.f32 0.0, %v1443
    %1445 = vdwg.mxu0
    %1446 = vmatprep.subr.mxu0 %v66
    %1447 = vmatpush1.msra.mxu0 %v65
    %1448 = vmatprep.subr.mxu0 %v70
    %1449 = vmatpush1.msra.mxu0 %v69
    %1450 = vmatprep.subr.mxu0 %v74
    %1451 = vmatpush1.msra.mxu0 %v73
    %1452 = vmatprep.subr.mxu0 %v78
    %1453 = vmatpush1.msra.mxu0 %v77
    %1454 = vmatprep.subr.mxu0 %v82
    %1455 = vmatpush1.msra.mxu0 %v81
    %1456 = vmatprep.subr.mxu0 %v86
    %1457 = vmatpush1.msra.mxu0 %v85
    %1458 = vmatprep.subr.mxu0 %v90
    %1459 = vmatpush1.msra.mxu0 %v89
    %1460 = vmatprep.subr.mxu0 %v94
    %1461 = vmatpush1.msra.mxu0 %v93
    %1462 = vmatprep.subr.mxu0 %v98
    %1463 = vmatpush1.msra.mxu0 %v97
    %1464 = vmatprep.subr.mxu0 %v102
    %1465 = vmatpush1.msra.mxu0 %v101
    %1466 = vmatprep.subr.mxu0 %v106
    %1467 = vmatpush1.msra.mxu0 %v105
    %1468 = vmatprep.subr.mxu0 %v110
    %1469 = vmatpush1.msra.mxu0 %v109
    %1470 = vmatprep.subr.mxu0 %v114
    %1471 = vmatpush1.msra.mxu0 %v113
    %1472 = vmatprep.subr.mxu0 %v118
    %1473 = vmatpush1.msra.mxu0 %v117
    %1474 = vmatprep.subr.mxu0 %v122
    %1475 = vmatpush1.msra.mxu0 %v121
    %1476 = vmatprep.subr.mxu0 %v126
    %1477 = vmatpush1.msra.mxu0 %v125
    %1478 = vmatprep.subr.mxu0 0.0
    %1479 = vmatpush1.msra.mxu0 0.0
    %1480 = vmatprep.subr.mxu0 0.0
    %1481 = vmatpush1.msra.mxu0 0.0
    %1482 = vmatprep.subr.mxu0 0.0
    %1483 = vmatpush1.msra.mxu0 0.0
    %1484 = vmatprep.subr.mxu0 0.0
    %1485 = vmatpush1.msra.mxu0 0.0
    %1486 = vmatprep.subr.mxu0 0.0
    %1487 = vmatpush1.msra.mxu0 0.0
    %1488 = vmatprep.subr.mxu0 0.0
    %1489 = vmatpush1.msra.mxu0 0.0
    %1490 = vmatprep.subr.mxu0 0.0
    %1491 = vmatpush1.msra.mxu0 0.0
    %1492 = vmatprep.subr.mxu0 0.0
    %1493 = vmatpush1.msra.mxu0 0.0
    %1494 = vmatprep.subr.mxu0 0.0
    %1495 = vmatpush1.msra.mxu0 0.0
    %1496 = vmatprep.subr.mxu0 0.0
    %1497 = vmatpush1.msra.mxu0 0.0
    %1498 = vmatprep.subr.mxu0 0.0
    %1499 = vmatpush1.msra.mxu0 0.0
    %1500 = vmatprep.subr.mxu0 0.0
    %1501 = vmatpush1.msra.mxu0 0.0
    %1502 = vmatprep.subr.mxu0 0.0
    %1503 = vmatpush1.msra.mxu0 0.0
    %1504 = vmatprep.subr.mxu0 0.0
    %1505 = vmatpush1.msra.mxu0 0.0
    %1506 = vmatprep.subr.mxu0 0.0
    %1507 = vmatpush1.msra.mxu0 0.0
    %1508 = vmatprep.subr.mxu0 0.0
    %1509 = vmatpush1.msra.mxu0 0.0
    %1510 = vmatprep.mubr.f32.mxu0 0.0
    %1511 = vmatmul.mubr.f32.gmra.mrb[0].mxu0 %v1368
    %v1512 = vpop.f32.mrb[0].mxu0
    %v1513 = vadd.f32 0.0, %v1512
    %v1514 = vpop.f32.mrb[0].mxu0
    %v1515 = vadd.f32 0.0, %v1514
    %1516 = vdwg.mxu0
    %v1517 = vadd.f32 %v1371, %v1442
    %v1518 = vadd.f32 %v1372, %v1444
    %v1519 = vadd.f32 %v1373, %v1513
    %v1520 = vadd.f32 %v1374, %v1515
    %v1521 = vxor.u32 %v1517, 2147483648
    %v1522 = vmul.f32 %v1521, 1.442695
    %v1523 = vpow.pop %v1522
    %v1524 = vadd.f32 %v1523, 1.0
    %v1525 = vrcp.pop %v1524
    %v1526 = vmul.f32 1.0, %v1525
    %v1527 = vxor.u32 %v1518, 2147483648
    %v1528 = vmul.f32 %v1527, 1.442695
    %v1529 = vpow.pop %v1528
    %v1530 = vadd.f32 %v1529, 1.0
    %v1531 = vrcp.pop %v1530
    %v1532 = vmul.f32 1.0, %v1531
    %v1533 = vtanh.pop %v1519
    %v1534 = vxor.u32 %v1520, 2147483648
    %v1535 = vmul.f32 %v1534, 1.442695
    %v1536 = vpow.pop %v1535
    %v1537 = vadd.f32 %v1536, 1.0
    %v1538 = vrcp.pop %v1537
    %v1539 = vmul.f32 1.0, %v1538
    %v1540 = vmul.f32 %v1532, %v1366
    %v1541 = vmul.f32 %v1526, %v1533
    %v1542 = vadd.f32 %v1540, %v1541
    %v1543 = vtanh.pop %v1542
    %v1544 = vmul.f32 %v1539, %v1543
    %s1545 = scalar_lea.vmem [#allocation3], 48
    %1546 = vst [vmem:[%s1545] sm:$0xff] %v1544
    %v1547 = vld [vmem:[%s311] sm:$0xff]
    %v1548 = vld [vmem:[%s311 + $0x8] sm:$0xff]
    %v1549 = vld [vmem:[%s311 + $0x10] sm:$0xff]
    %v1550 = vld [vmem:[%s311 + $0x18] sm:$0xff]
    %1551 = vmatprep.subr.mxu0 %v64
    %1552 = vmatpush1.msra.mxu0 %v63
    %1553 = vmatprep.subr.mxu0 %v68
    %1554 = vmatpush1.msra.mxu0 %v67
    %1555 = vmatprep.subr.mxu0 %v72
    %1556 = vmatpush1.msra.mxu0 %v71
    %1557 = vmatprep.subr.mxu0 %v76
    %1558 = vmatpush1.msra.mxu0 %v75
    %1559 = vmatprep.subr.mxu0 %v80
    %1560 = vmatpush1.msra.mxu0 %v79
    %1561 = vmatprep.subr.mxu0 %v84
    %1562 = vmatpush1.msra.mxu0 %v83
    %1563 = vmatprep.subr.mxu0 %v88
    %1564 = vmatpush1.msra.mxu0 %v87
    %1565 = vmatprep.subr.mxu0 %v92
    %1566 = vmatpush1.msra.mxu0 %v91
    %1567 = vmatprep.subr.mxu0 %v96
    %1568 = vmatpush1.msra.mxu0 %v95
    %1569 = vmatprep.subr.mxu0 %v100
    %1570 = vmatpush1.msra.mxu0 %v99
    %1571 = vmatprep.subr.mxu0 %v104
    %1572 = vmatpush1.msra.mxu0 %v103
    %1573 = vmatprep.subr.mxu0 %v108
    %1574 = vmatpush1.msra.mxu0 %v107
    %1575 = vmatprep.subr.mxu0 %v112
    %1576 = vmatpush1.msra.mxu0 %v111
    %1577 = vmatprep.subr.mxu0 %v116
    %1578 = vmatpush1.msra.mxu0 %v115
    %1579 = vmatprep.subr.mxu0 %v120
    %1580 = vmatpush1.msra.mxu0 %v119
    %1581 = vmatprep.subr.mxu0 %v124
    %1582 = vmatpush1.msra.mxu0 %v123
    %1583 = vmatprep.subr.mxu0 0.0
    %1584 = vmatpush1.msra.mxu0 0.0
    %1585 = vmatprep.subr.mxu0 0.0
    %1586 = vmatpush1.msra.mxu0 0.0
    %1587 = vmatprep.subr.mxu0 0.0
    %1588 = vmatpush1.msra.mxu0 0.0
    %1589 = vmatprep.subr.mxu0 0.0
    %1590 = vmatpush1.msra.mxu0 0.0
    %1591 = vmatprep.subr.mxu0 0.0
    %1592 = vmatpush1.msra.mxu0 0.0
    %1593 = vmatprep.subr.mxu0 0.0
    %1594 = vmatpush1.msra.mxu0 0.0
    %1595 = vmatprep.subr.mxu0 0.0
    %1596 = vmatpush1.msra.mxu0 0.0
    %1597 = vmatprep.subr.mxu0 0.0
    %1598 = vmatpush1.msra.mxu0 0.0
    %1599 = vmatprep.subr.mxu0 0.0
    %1600 = vmatpush1.msra.mxu0 0.0
    %1601 = vmatprep.subr.mxu0 0.0
    %1602 = vmatpush1.msra.mxu0 0.0
    %1603 = vmatprep.subr.mxu0 0.0
    %1604 = vmatpush1.msra.mxu0 0.0
    %1605 = vmatprep.subr.mxu0 0.0
    %1606 = vmatpush1.msra.mxu0 0.0
    %1607 = vmatprep.subr.mxu0 0.0
    %1608 = vmatpush1.msra.mxu0 0.0
    %1609 = vmatprep.subr.mxu0 0.0
    %1610 = vmatpush1.msra.mxu0 0.0
    %1611 = vmatprep.subr.mxu0 0.0
    %1612 = vmatpush1.msra.mxu0 0.0
    %1613 = vmatprep.subr.mxu0 0.0
    %1614 = vmatpush1.msra.mxu0 0.0
    %1615 = vmatprep.mubr.f32.mxu0 0.0
    %1616 = vmatmul.mubr.f32.gmra.mrb[0].mxu0 %v1544
    %v1617 = vpop.f32.mrb[0].mxu0
    %v1618 = vadd.f32 0.0, %v1617
    %v1619 = vpop.f32.mrb[0].mxu0
    %v1620 = vadd.f32 0.0, %v1619
    %1621 = vdwg.mxu0
    %1622 = vmatprep.subr.mxu0 %v66
    %1623 = vmatpush1.msra.mxu0 %v65
    %1624 = vmatprep.subr.mxu0 %v70
    %1625 = vmatpush1.msra.mxu0 %v69
    %1626 = vmatprep.subr.mxu0 %v74
    %1627 = vmatpush1.msra.mxu0 %v73
    %1628 = vmatprep.subr.mxu0 %v78
    %1629 = vmatpush1.msra.mxu0 %v77
    %1630 = vmatprep.subr.mxu0 %v82
    %1631 = vmatpush1.msra.mxu0 %v81
    %1632 = vmatprep.subr.mxu0 %v86
    %1633 = vmatpush1.msra.mxu0 %v85
    %1634 = vmatprep.subr.mxu0 %v90
    %1635 = vmatpush1.msra.mxu0 %v89
    %1636 = vmatprep.subr.mxu0 %v94
    %1637 = vmatpush1.msra.mxu0 %v93
    %1638 = vmatprep.subr.mxu0 %v98
    %1639 = vmatpush1.msra.mxu0 %v97
    %1640 = vmatprep.subr.mxu0 %v102
    %1641 = vmatpush1.msra.mxu0 %v101
    %1642 = vmatprep.subr.mxu0 %v106
    %1643 = vmatpush1.msra.mxu0 %v105
    %1644 = vmatprep.subr.mxu0 %v110
    %1645 = vmatpush1.msra.mxu0 %v109
    %1646 = vmatprep.subr.mxu0 %v114
    %1647 = vmatpush1.msra.mxu0 %v113
    %1648 = vmatprep.subr.mxu0 %v118
    %1649 = vmatpush1.msra.mxu0 %v117
    %1650 = vmatprep.subr.mxu0 %v122
    %1651 = vmatpush1.msra.mxu0 %v121
    %1652 = vmatprep.subr.mxu0 %v126
    %1653 = vmatpush1.msra.mxu0 %v125
    %1654 = vmatprep.subr.mxu0 0.0
    %1655 = vmatpush1.msra.mxu0 0.0
    %1656 = vmatprep.subr.mxu0 0.0
    %1657 = vmatpush1.msra.mxu0 0.0
    %1658 = vmatprep.subr.mxu0 0.0
    %1659 = vmatpush1.msra.mxu0 0.0
    %1660 = vmatprep.subr.mxu0 0.0
    %1661 = vmatpush1.msra.mxu0 0.0
    %1662 = vmatprep.subr.mxu0 0.0
    %1663 = vmatpush1.msra.mxu0 0.0
    %1664 = vmatprep.subr.mxu0 0.0
    %1665 = vmatpush1.msra.mxu0 0.0
    %1666 = vmatprep.subr.mxu0 0.0
    %1667 = vmatpush1.msra.mxu0 0.0
    %1668 = vmatprep.subr.mxu0 0.0
    %1669 = vmatpush1.msra.mxu0 0.0
    %1670 = vmatprep.subr.mxu0 0.0
    %1671 = vmatpush1.msra.mxu0 0.0
    %1672 = vmatprep.subr.mxu0 0.0
    %1673 = vmatpush1.msra.mxu0 0.0
    %1674 = vmatprep.subr.mxu0 0.0
    %1675 = vmatpush1.msra.mxu0 0.0
    %1676 = vmatprep.subr.mxu0 0.0
    %1677 = vmatpush1.msra.mxu0 0.0
    %1678 = vmatprep.subr.mxu0 0.0
    %1679 = vmatpush1.msra.mxu0 0.0
    %1680 = vmatprep.subr.mxu0 0.0
    %1681 = vmatpush1.msra.mxu0 0.0
    %1682 = vmatprep.subr.mxu0 0.0
    %1683 = vmatpush1.msra.mxu0 0.0
    %1684 = vmatprep.subr.mxu0 0.0
    %1685 = vmatpush1.msra.mxu0 0.0
    %1686 = vmatprep.mubr.f32.mxu0 0.0
    %1687 = vmatmul.mubr.f32.gmra.mrb[0].mxu0 %v1544
    %v1688 = vpop.f32.mrb[0].mxu0
    %v1689 = vadd.f32 0.0, %v1688
    %v1690 = vpop.f32.mrb[0].mxu0
    %v1691 = vadd.f32 0.0, %v1690
    %1692 = vdwg.mxu0
    %v1693 = vadd.f32 %v1547, %v1618
    %v1694 = vadd.f32 %v1548, %v1620
    %v1695 = vadd.f32 %v1549, %v1689
    %v1696 = vadd.f32 %v1550, %v1691
    %v1697 = vxor.u32 %v1693, 2147483648
    %v1698 = vmul.f32 %v1697, 1.442695
    %v1699 = vpow.pop %v1698
    %v1700 = vadd.f32 %v1699, 1.0
    %v1701 = vrcp.pop %v1700
    %v1702 = vmul.f32 1.0, %v1701
    %v1703 = vxor.u32 %v1694, 2147483648
    %v1704 = vmul.f32 %v1703, 1.442695
    %v1705 = vpow.pop %v1704
    %v1706 = vadd.f32 %v1705, 1.0
    %v1707 = vrcp.pop %v1706
    %v1708 = vmul.f32 1.0, %v1707
    %v1709 = vtanh.pop %v1695
    %v1710 = vxor.u32 %v1696, 2147483648
    %v1711 = vmul.f32 %v1710, 1.442695
    %v1712 = vpow.pop %v1711
    %v1713 = vadd.f32 %v1712, 1.0
    %v1714 = vrcp.pop %v1713
    %v1715 = vmul.f32 1.0, %v1714
    %v1716 = vmul.f32 %v1708, %v1542
    %v1717 = vmul.f32 %v1702, %v1709
    %v1718 = vadd.f32 %v1716, %v1717
    %v1719 = vtanh.pop %v1718
    %v1720 = vmul.f32 %v1715, %v1719
    %s1721 = scalar_lea.vmem [#allocation3], 56
    %1722 = vst [vmem:[%s1721] sm:$0xff] %v1720
    %v1723 = vld [vmem:[#allocation3] sm:$0xff]
    %v1724 = vld [vmem:[%s4] sm:$0x1]
    %v1725 = vlaneseq
    %v1726 = vshrl.u32 %v1725, 7
    %v1727 = vsub.s32 0, %v1726
    %v1728 = vrot.slane %v1724, %v1727
    %v1729 = vmul.f32 %v1723, %v1728
    %1730 = vadd.xlane.f32.xlu0 %v1729
    %v1731 = vpop.xlane.xlu0 %1730
    %v1732 = vsel %vm130, %v1731, 0.0
    %v1733 = vld [vmem:[%s665] sm:$0xff]
    %v1734 = vld [vmem:[%s4 + $0x1] sm:$0x1]
    %v1735 = vlaneseq
    %v1736 = vshrl.u32 %v1735, 7
    %v1737 = vsub.s32 0, %v1736
    %v1738 = vrot.slane %v1734, %v1737
    %v1739 = vmul.f32 %v1733, %v1738
    %1740 = vadd.xlane.f32.xlu0 %v1739
    %v1741 = vpop.xlane.xlu0 %1740
    %v1742 = vsel %vm190, %v1741, %v1732
    %v1743 = vld [vmem:[%s841] sm:$0xff]
    %v1744 = vld [vmem:[%s4 + $0x2] sm:$0x1]
    %v1745 = vlaneseq
    %v1746 = vshrl.u32 %v1745, 7
    %v1747 = vsub.s32 0, %v1746
    %v1748 = vrot.slane %v1744, %v1747
    %v1749 = vmul.f32 %v1743, %v1748
    %1750 = vadd.xlane.f32.xlu0 %v1749
    %v1751 = vpop.xlane.xlu0 %1750
    %v1752 = vsel %vm208, %v1751, %v1742
    %v1753 = vld [vmem:[%s1017] sm:$0xff]
    %v1754 = vld [vmem:[%s4 + $0x3] sm:$0x1]
    %v1755 = vlaneseq
    %v1756 = vshrl.u32 %v1755, 7
    %v1757 = vsub.s32 0, %v1756
    %v1758 = vrot.slane %v1754, %v1757
    %v1759 = vmul.f32 %v1753, %v1758
    %1760 = vadd.xlane.f32.xlu0 %v1759
    %v1761 = vpop.xlane.xlu0 %1760
    %v1762 = vsel %vm226, %v1761, %v1752
    %v1763 = vld [vmem:[%s1193] sm:$0xff]
    %v1764 = vld [vmem:[%s4 + $0x4] sm:$0x1]
    %v1765 = vlaneseq
    %v1766 = vshrl.u32 %v1765, 7
    %v1767 = vsub.s32 0, %v1766
    %v1768 = vrot.slane %v1764, %v1767
    %v1769 = vmul.f32 %v1763, %v1768
    %1770 = vadd.xlane.f32.xlu0 %v1769
    %v1771 = vpop.xlane.xlu0 %1770
    %v1772 = vsel %vm244, %v1771, %v1762
    %v1773 = vld [vmem:[%s1369] sm:$0xff]
    %v1774 = vld [vmem:[%s4 + $0x5] sm:$0x1]
    %v1775 = vlaneseq
    %v1776 = vshrl.u32 %v1775, 7
    %v1777 = vsub.s32 0, %v1776
    %v1778 = vrot.slane %v1774, %v1777
    %v1779 = vmul.f32 %v1773, %v1778
    %1780 = vadd.xlane.f32.xlu0 %v1779
    %v1781 = vpop.xlane.xlu0 %1780
    %v1782 = vsel %vm262, %v1781, %v1772
    %v1783 = vld [vmem:[%s1545] sm:$0xff]
    %v1784 = vld [vmem:[%s4 + $0x6] sm:$0x1]
    %v1785 = vlaneseq
    %v1786 = vshrl.u32 %v1785, 7
    %v1787 = vsub.s32 0, %v1786
    %v1788 = vrot.slane %v1784, %v1787
    %v1789 = vmul.f32 %v1783, %v1788
    %1790 = vadd.xlane.f32.xlu0 %v1789
    %v1791 = vpop.xlane.xlu0 %1790
    %v1792 = vsel %vm280, %v1791, %v1782
    %v1793 = vld [vmem:[%s1721] sm:$0xff]
    %v1794 = vld [vmem:[%s4 + $0x7] sm:$0x1]
    %v1795 = vlaneseq
    %v1796 = vshrl.u32 %v1795, 7
    %v1797 = vsub.s32 0, %v1796
    %v1798 = vrot.slane %v1794, %v1797
    %v1799 = vmul.f32 %v1793, %v1798
    %1800 = vadd.xlane.f32.xlu0 %v1799
    %v1801 = vpop.xlane.xlu0 %1800
    %v1802 = vsel %vm298, %v1801, %v1792
    %v1803 = vld [vmem:[%s5] sm:$0x1]
    %v1805 = vlaneseq
    %v1806 = vshrl.u32 %v1805, 7
    %v1807 = vsub.s32 0, %v1806
    %v1808 = vrot.slane %v1803, %v1807
    %v1810 = vadd.f32 %v1802, %v1808
    %1811 = vst.msk [vmem:[#allocation10] sm:$0xff] %vm132, %v1810
    // Predicated region
    $region38: #{tpu_custom_call.1} parent=1 // pred_check
      _
    $region39: #{tpu_custom_call.1} parent=1 // pred_check_branch
      %1813 = sbr.rel (0) target = $region41
    $region40: #{tpu_custom_call.1} parent=1 // pred_region
      %s1815 = ssub.s32 128, 128
      %1816 = vsyncadd [#allocation6], %s1815
      %s1818 = sshll.u32 [#allocation10], 4
      %s1819 = int_to_ptr.vmem [resolvable:$true] %s1818
      %1821 = dma.vmem_to_hbm [thread:$0]  %s1819, 128, %s6, [#allocation6]
    $region41: #{tpu_custom_call.1} parent=1 // pred_fallthru
      _
    // Predicated region
    $region42: #{tpu_custom_call.1} parent=1 // pred_check
      _
    $region43: #{tpu_custom_call.1} parent=1 // pred_check_branch
      %1823 = sbr.rel (0) target = $region45
    $region44: #{tpu_custom_call.1} parent=1 // pred_region
      %1824 = dma.done [#allocation6], 128
    $region45: #{tpu_custom_call.1} parent=1 // pred_fallthru
      _
    %1825 = vsyncpa [#allocation5], 1
    %1826 = vsyncpa [#allocation8], 1
    %1827 = vsyncpa [#allocation6], 1

</llo_original>
